<compile_context>
chip_gen: v7x
topology: tpu7x:2x2x1
jax: 0.10.0
libtpu: 0.0.40
codegen_flags: <defaults>
</compile_context>

<pallas_src>
import functools

import jax
import jax.numpy as jnp
from jax.experimental import pallas as pl
from jax.experimental.pallas import tpu as pltpu


def cohere_mlp_kernel(x_ref, wgu_ref, wd_ref, o_ref, acc_ref):
    """One (token-tile, I-tile) step: acc += silu(x@Wg_k) * (x@Wu_k) @ Wd_k."""
    k = pl.program_id(1)

    @pl.when(k == 0)
    def _init():
        acc_ref[...] = jnp.zeros_like(acc_ref)

    x = x_ref[...]
    # Merged gate+up projection: one MXU pass over a [H, 2*tile_i] weight slab.
    gu = jnp.dot(x, wgu_ref[...], preferred_element_type=jnp.float32)
    tile_i = gu.shape[1] // 2
    gate = gu[:, :tile_i]           # lane-aligned slices (tile_i % 128 == 0)
    up = gu[:, tile_i:]
    # SiluAndMul in f32 (sigmoid on the EUP), cast back for the down matmul.
    act = (gate * jax.nn.sigmoid(gate) * up).astype(wd_ref.dtype)
    # Partial down projection, accumulated in f32 across the I (reduction) axis.
    acc_ref[...] += jnp.dot(act, wd_ref[...], preferred_element_type=jnp.float32)

    @pl.when(k == pl.num_programs(1) - 1)
    def _finalize():
        o_ref[...] = acc_ref[...].astype(o_ref.dtype)


@functools.partial(jax.jit, static_argnames=("tile_m", "tile_i"))
def cohere_mlp(x, w_gate, w_up, w_down, *, tile_m=256, tile_i=512):
    """x: [T, H]; w_gate/w_up: [H, I]; w_down: [I, H] -> [T, H]."""
    T, H = x.shape
    I = w_gate.shape[1]
    assert w_gate.shape == (H, I) and w_up.shape == (H, I) and w_down.shape == (I, H)
    assert H % 128 == 0, "hidden size must be a multiple of 128 (lane dim)"

    tile_i = min(tile_i, I)
    assert I % tile_i == 0 and tile_i % 128 == 0, "tile_i must divide I and be % 128"

    # Token tiling: keep tile_m a bf16-legal sublane multiple; pad tokens if needed.
    tile_m = max(16, min(tile_m, T))
    T_pad = pl.cdiv(T, tile_m) * tile_m
    x_in = x if T_pad == T else jnp.pad(x, ((0, T_pad - T), (0, 0)))

    n_k = I // tile_i
    # Block-interleave gate/up so grid step k sees a contiguous [H, 2*tile_i] slab
    # laid out as [gate_k | up_k]. (One-time weight preprocessing; in a real model
    # the merged gate_up weight would be stored in this layout.)
    w_gu = jnp.stack(
        [w_gate.reshape(H, n_k, tile_i), w_up.reshape(H, n_k, tile_i)], axis=2
    ).reshape(H, 2 * I)

    # Explicit scoped-VMEM budget: double-buffered tiles + f32 accumulator + headroom.
    itemsize = jnp.dtype(x.dtype).itemsize
    needed = (
        tile_m * H * 4                       # f32 accumulator scratch
        + 2 * tile_m * H * itemsize          # x tile (double buffered)
        + 2 * H * 2 * tile_i * itemsize      # merged gate/up weight tile
        + 2 * tile_i * H * itemsize          # down weight tile
        + 2 * tile_m * H * itemsize          # output tile
    )
    vmem_limit = min(max(int(needed * 1.3), 32 * 1024 * 1024), 100 * 1024 * 1024)

    cost = pl.CostEstimate(
        flops=6 * T_pad * H * I,
        transcendentals=T_pad * I,                                   # sigmoid
        bytes_accessed=(2 * T_pad * H + 3 * H * I) * itemsize,
    )

    grid = (T_pad // tile_m, n_k)
    out = pl.pallas_call(
        cohere_mlp_kernel,
        out_shape=jax.ShapeDtypeStruct((T_pad, H), x.dtype),
        grid_spec=pltpu.PrefetchScalarGridSpec(
            num_scalar_prefetch=0,
            grid=grid,
            in_specs=[
                pl.BlockSpec((tile_m, H), lambda i, k: (i, 0)),        # x (resident over k)
                pl.BlockSpec((H, 2 * tile_i), lambda i, k: (0, k)),    # [gate_k | up_k]
                pl.BlockSpec((tile_i, H), lambda i, k: (k, 0)),        # down weight slab
            ],
            out_specs=pl.BlockSpec((tile_m, H), lambda i, k: (i, 0)),  # accumulator output
            scratch_shapes=[pltpu.VMEM((tile_m, H), jnp.float32)],
        ),
        compiler_params=pltpu.CompilerParams(
            dimension_semantics=("parallel", "arbitrary"),
            vmem_limit_bytes=vmem_limit,
        ),
        cost_estimate=cost,
    )(x_in, w_gu, w_down)

    return out if T_pad == T else out[:T]


def cohere_mlp_ref(x, w_gate, w_up, w_down):
    xf = x.astype(jnp.float32)
    gate = xf @ w_gate.astype(jnp.float32)
    up = xf @ w_up.astype(jnp.float32)
    act = gate * jax.nn.sigmoid(gate) * up
    return (act @ w_down.astype(jnp.float32)).astype(x.dtype)


if __name__ == "__main__":
    # Small shapes consistent with the module's forward (T tokens, hidden H,
    # intermediate I), sized to exercise both grid axes: 2 token tiles x 2 I tiles.
    T, H, I = 256, 256, 512
    key = jax.random.PRNGKey(0)
    kx, kg, ku, kd = jax.random.split(key, 4)

    dtype = jnp.bfloat16
    x = jax.random.normal(kx, (T, H), dtype=jnp.float32).astype(dtype)
    w_gate = (jax.random.normal(kg, (H, I), dtype=jnp.float32) * 0.02).astype(dtype)
    w_up = (jax.random.normal(ku, (H, I), dtype=jnp.float32) * 0.02).astype(dtype)
    w_down = (jax.random.normal(kd, (I, H), dtype=jnp.float32) * 0.02).astype(dtype)

    out = cohere_mlp(x, w_gate, w_up, w_down, tile_m=128, tile_i=256)
    out = jax.block_until_ready(out)

    ref = cohere_mlp_ref(x, w_gate, w_up, w_down)
    assert out.shape == (T, H)
    err = jnp.max(jnp.abs(out.astype(jnp.float32) - ref.astype(jnp.float32)))
    scale = jnp.max(jnp.abs(ref.astype(jnp.float32))) + 1e-6
    assert float(err / scale) < 2e-2, f"mismatch vs reference: rel err {float(err / scale)}"

    print("KERNEL_OK")
</pallas_src>

<mosaic_0001>
module attributes {stable_mosaic.version = 11 : i64} {
  func.func @cohere_mlp_kernel(%arg0: i32, %arg1: i32, %arg2: memref<128x256xbf16, #tpu.memory_space<vmem>>, %arg3: memref<256x512xbf16, #tpu.memory_space<vmem>>, %arg4: memref<256x256xbf16, #tpu.memory_space<vmem>>, %arg5: memref<128x256xbf16, #tpu.memory_space<vmem>>, %arg6: memref<128x256xf32, #tpu.memory_space<vmem>>) attributes {dimension_semantics = [#tpu.dimension_semantics<parallel>, #tpu.dimension_semantics<arbitrary>], iteration_bounds = array<i64: 2, 2>, scalar_prefetch = 0 : i64, scratch_operands = 1 : i64, tpu.core_type = #tpu.core_type<tc>, window_params = [{transform_indices = @transform_0, window_bounds = array<i64: 128, 256>}, {transform_indices = @transform_1, window_bounds = array<i64: 256, 512>}, {transform_indices = @transform_2, window_bounds = array<i64: 256, 256>}, {transform_indices = @transform_3, window_bounds = array<i64: 128, 256>}]} {
    %c0_i32 = arith.constant 0 : i32
    %0 = arith.cmpi eq, %arg1, %c0_i32 : i32
    %1 = arith.extui %0 : i1 to i32
    %c0_i32_0 = arith.constant 0 : i32
    %2 = arith.cmpi ne, %1, %c0_i32_0 : i32
    scf.if %2 {
      %cst_13 = arith.constant 0.000000e+00 : f32
      %24 = vector.broadcast %cst_13 : f32 to vector<128x256xf32>
      %c0_14 = arith.constant 0 : index
      %c0_15 = arith.constant 0 : index
      %25 = vector.load %arg6[%c0_14, %c0_15] : memref<128x256xf32, #tpu.memory_space<vmem>>, vector<128x256xf32>
      tpu.vector_store %arg6[%c0_14, %c0_15], %24 {strides = array<i32>} : memref<128x256xf32, #tpu.memory_space<vmem>>, vector<128x256xf32>,
    } else {
    }
    %c0 = arith.constant 0 : index
    %c0_1 = arith.constant 0 : index
    %3 = vector.load %arg2[%c0, %c0_1] : memref<128x256xbf16, #tpu.memory_space<vmem>>, vector<128x256xbf16>
    %c0_2 = arith.constant 0 : index
    %c0_3 = arith.constant 0 : index
    %4 = vector.load %arg3[%c0_2, %c0_3] : memref<256x512xbf16, #tpu.memory_space<vmem>>, vector<256x512xbf16>
    %cst = arith.constant dense<0.000000e+00> : vector<128x512xf32>
    %5 = tpu.matmul %3, %4, %cst {dimension_numbers = #tpu.dot_dimension_numbers<[1], [0], [0], [1], [0, 0, 1, 1], [], []>} : vector<128x256xbf16>, vector<256x512xbf16>, vector<128x512xf32> -> vector<128x512xf32>
    %6 = vector.extract_strided_slice %5 {offsets = [0, 0], sizes = [128, 256], strides = [1, 1]} : vector<128x512xf32> to vector<128x256xf32>
    %7 = vector.extract_strided_slice %5 {offsets = [0, 256], sizes = [128, 256], strides = [1, 1]} : vector<128x512xf32> to vector<128x256xf32>
    %8 = arith.negf %6 : vector<128x256xf32>
    %9 = math.exp %8 : vector<128x256xf32>
    %cst_4 = arith.constant 1.000000e+00 : f32
    %10 = vector.broadcast %cst_4 : f32 to vector<128x256xf32>
    %11 = arith.addf %10, %9 : vector<128x256xf32>
    %12 = arith.divf %10, %11 : vector<128x256xf32>
    %13 = arith.mulf %6, %12 : vector<128x256xf32>
    %14 = arith.mulf %13, %7 : vector<128x256xf32>
    %15 = arith.truncf %14 : vector<128x256xf32> to vector<128x256xbf16>
    %c0_5 = arith.constant 0 : index
    %c0_6 = arith.constant 0 : index
    %16 = vector.load %arg6[%c0_5, %c0_6] : memref<128x256xf32, #tpu.memory_space<vmem>>, vector<128x256xf32>
    %c0_7 = arith.constant 0 : index
    %c0_8 = arith.constant 0 : index
    %17 = vector.load %arg4[%c0_7, %c0_8] : memref<256x256xbf16, #tpu.memory_space<vmem>>, vector<256x256xbf16>
    %cst_9 = arith.constant dense<0.000000e+00> : vector<128x256xf32>
    %18 = tpu.matmul %15, %17, %cst_9 {dimension_numbers = #tpu.dot_dimension_numbers<[1], [0], [0], [1], [0, 0, 1, 1], [], []>} : vector<128x256xbf16>, vector<256x256xbf16>, vector<128x256xf32> -> vector<128x256xf32>
    %19 = arith.addf %16, %18 : vector<128x256xf32>
    %c0_10 = arith.constant 0 : index
    %c0_11 = arith.constant 0 : index
    %20 = vector.load %arg6[%c0_10, %c0_11] : memref<128x256xf32, #tpu.memory_space<vmem>>, vector<128x256xf32>
    tpu.vector_store %arg6[%c0_10, %c0_11], %19 {strides = array<i32>} : memref<128x256xf32, #tpu.memory_space<vmem>>, vector<128x256xf32>,
    %c1_i32 = arith.constant 1 : i32
    %21 = arith.cmpi eq, %arg1, %c1_i32 : i32
    %22 = arith.extui %21 : i1 to i32
    %c0_i32_12 = arith.constant 0 : i32
    %23 = arith.cmpi ne, %22, %c0_i32_12 : i32
    scf.if %23 {
      %c0_13 = arith.constant 0 : index
      %c0_14 = arith.constant 0 : index
      %24 = vector.load %arg6[%c0_13, %c0_14] : memref<128x256xf32, #tpu.memory_space<vmem>>, vector<128x256xf32>
      %25 = arith.truncf %24 : vector<128x256xf32> to vector<128x256xbf16>
      %c0_15 = arith.constant 0 : index
      %c0_16 = arith.constant 0 : index
      %26 = vector.load %arg5[%c0_15, %c0_16] : memref<128x256xbf16, #tpu.memory_space<vmem>>, vector<128x256xbf16>
      tpu.vector_store %arg5[%c0_15, %c0_16], %25 {strides = array<i32>} : memref<128x256xbf16, #tpu.memory_space<vmem>>, vector<128x256xbf16>,
    } else {
    }
    return
  }
  func.func @transform_0(%arg0: i32, %arg1: i32) -> (i32, i32) {
    %c0_i32 = arith.constant 0 : i32
    %c0_i32_0 = arith.constant 0 : i32
    return %arg0, %c0_i32 : i32, i32
  }
  func.func @transform_1(%arg0: i32, %arg1: i32) -> (i32, i32) {
    %c0_i32 = arith.constant 0 : i32
    %c0_i32_0 = arith.constant 0 : i32
    return %c0_i32, %arg1 : i32, i32
  }
  func.func @transform_2(%arg0: i32, %arg1: i32) -> (i32, i32) {
    %c0_i32 = arith.constant 0 : i32
    %c0_i32_0 = arith.constant 0 : i32
    return %arg1, %c0_i32 : i32, i32
  }
  func.func @transform_3(%arg0: i32, %arg1: i32) -> (i32, i32) {
    %c0_i32 = arith.constant 0 : i32
    %c0_i32_0 = arith.constant 0 : i32
    return %arg0, %c0_i32 : i32, i32
  }
}

</mosaic_0001>

<llo_original>
// kernel: cohere_mlp.1
$region0: #{cohere_mlp.1}
  #allocation0 [shape = 'u32[]', space=smem, size = 0x4, offset = 0x4, fixed_abs, tag = 'smem constant byte address 0x4 - core index']
  #allocation1 [shape = 'u32[144,128]{1,0:T(1,128)}', space=vmem, size = 0x12000, scoped, tag = 'internal scratch']
  #allocation2 [shape = 'f32[128,256]{1,0:T(8,128)}', space=vmem, size = 0x20000, scoped, tag = 'scratch operand']
  %s0 = inlined_call_operand.vmem [shape: bf16[256,256], index: 0, kind: input, shape index: {}]
  %s1 = inlined_call_operand.vmem [shape: bf16[256,1024], index: 1, kind: input, shape index: {}]
  %s2 = inlined_call_operand.vmem [shape: bf16[512,256], index: 2, kind: input, shape index: {}]
  %s3 = inlined_call_operand.hbm [shape: bf16[256,256], index: 3, kind: output, shape index: {}]
  %s4 = sld [smem:[#allocation0]]
  $region76: #{cohere_mlp.1} parent=0
    _
  %s6 = ssub.s32 1, %s4
  %s7 = scalar_select 0, %s6, %s4
  $region1: #{cohere_mlp.1} parent=0
    #allocation3 [shape = 'u8[524288]{0}', space=vmem, size = 0x80000, scoped, tag = 'input window, operand 1']
    #allocation4 [shape = 'u8[131072]{0}', space=vmem, size = 0x20000, scoped, tag = 'output window, operand 0']
    #allocation5 [shape = 's32[2]{0}', space=sflag, size = 0x8, scoped, tag = 'scoped memory for cohere_mlp.1']
    %8 = vsyncpa [#allocation5], 0
    %s9 = scalar_lea.sflag [#allocation5], 1
    %10 = vsyncpa %s9, 0
    loop: start=0, step=1, limit=6
    $region2: #{cohere_mlp.1} parent=1 // loop_pre_header
      _
    $region3: #{cohere_mlp.1} parent=1 // loop_header
      %s12 = sphi 0, %s16
      %p13 = scmp.ge.s32.totalorder %s12, 6
      %s19 = sphi 0, %s31
      %s20 = sphi 0, %s27
      %s21 = sphi 0, %s19
      %s22 = sphi 0, %s20
      %s23 = sphi 0, %s21
      %s24 = sphi 0, %s22
      %s34 = sphi 0, %s36
      %s37 = sphi 0, %s34
      %s38 = sphi 0, %s37
      %s54 = sphi 0, %s38
      %s60 = sphi 0, %s62
      %s63 = sphi 0, %s60
      %s64 = sphi 0, %s63
      %s80 = sphi 0, %s64
      %s86 = sphi 0, %s88
      %s89 = sphi 0, %s86
      %s90 = sphi 0, %s89
      %s106 = sphi 0, %s90
      %s112 = sphi 0, %s114
      %s115 = sphi 0, %s112
      %s116 = sphi 0, %s115
      %s132 = sphi 0, %s116
    $region4: #{cohere_mlp.1} parent=1 // loop_header_branch
      %15 = sbr.rel (%p13) target = $region8
    $region5: #{cohere_mlp.1} parent=1 // loop_body
      %s17 = ssub.s32 %s12, 1
      %s18 = ssub.s32 %s12, 2
      %s25 = sadd.s32 1, %s20
      %p26 = scmp.ge.s32.totalorder %s25, 2
      %s27 = scalar_select %p26, 0, %s25
      %s28 = sadd.s32 1, %s19
      %s29 = scalar_select %p26, %s28, %s19
      %p30 = scmp.ge.s32.totalorder %s29, 2
      %s31 = scalar_select %p30, 0, %s29
      %s32 = ssub.s32 %s19, %s31
      %p33 = scmp.eq.s32.totalorder %s32, 0
      %s35 = sadd.s32 %s34, 1
      %s36 = scalar_select %p33, %s34, %s35
      %p39 = pneg %p33
      %p40 = scmp.eq.s32.totalorder %s12, 3
      %p41 = por %p39, %p40
      %p42 = scmp.ne.s32.totalorder %s34, %s37
      %p43 = scmp.eq.s32.totalorder %s12, 0
      %p44 = por %p42, %p43
      %p45 = scmp.ne.s32.totalorder %s34, %s37
      %p46 = scmp.eq.s32.totalorder %s17, 3
      %p47 = por %p45, %p46
      %p48 = scmp.ne.s32.totalorder %s37, %s38
      %p49 = scmp.eq.s32.totalorder %s17, 0
      %p50 = por %p48, %p49
      %p51 = scmp.ne.s32.totalorder %s37, %s38
      %p52 = scmp.eq.s32.totalorder %s18, 3
      %p53 = por %p51, %p52
      %p55 = scmp.ne.s32.totalorder %s38, %s54
      %p56 = scmp.eq.s32.totalorder %s18, 0
      %p57 = por %p55, %p56
      %s58 = ssub.s32 %s20, %s27
      %p59 = scmp.eq.s32.totalorder %s58, 0
      %s61 = sadd.s32 %s60, 1
      %s62 = scalar_select %p59, %s60, %s61
      %p65 = pneg %p59
      %p66 = scmp.eq.s32.totalorder %s12, 3
      %p67 = por %p65, %p66
      %p68 = scmp.ne.s32.totalorder %s60, %s63
      %p69 = scmp.eq.s32.totalorder %s12, 0
      %p70 = por %p68, %p69
      %p71 = scmp.ne.s32.totalorder %s60, %s63
      %p72 = scmp.eq.s32.totalorder %s17, 3
      %p73 = por %p71, %p72
      %p74 = scmp.ne.s32.totalorder %s63, %s64
      %p75 = scmp.eq.s32.totalorder %s17, 0
      %p76 = por %p74, %p75
      %p77 = scmp.ne.s32.totalorder %s63, %s64
      %p78 = scmp.eq.s32.totalorder %s18, 3
      %p79 = por %p77, %p78
      %p81 = scmp.ne.s32.totalorder %s64, %s80
      %p82 = scmp.eq.s32.totalorder %s18, 0
      %p83 = por %p81, %p82
      %s84 = ssub.s32 %s20, %s27
      %p85 = scmp.eq.s32.totalorder %s84, 0
      %s87 = sadd.s32 %s86, 1
      %s88 = scalar_select %p85, %s86, %s87
      %p91 = pneg %p85
      %p92 = scmp.eq.s32.totalorder %s12, 3
      %p93 = por %p91, %p92
      %p94 = scmp.ne.s32.totalorder %s86, %s89
      %p95 = scmp.eq.s32.totalorder %s12, 0
      %p96 = por %p94, %p95
      %p97 = scmp.ne.s32.totalorder %s86, %s89
      %p98 = scmp.eq.s32.totalorder %s17, 3
      %p99 = por %p97, %p98
      %p100 = scmp.ne.s32.totalorder %s89, %s90
      %p101 = scmp.eq.s32.totalorder %s17, 0
      %p102 = por %p100, %p101
      %p103 = scmp.ne.s32.totalorder %s89, %s90
      %p104 = scmp.eq.s32.totalorder %s18, 3
      %p105 = por %p103, %p104
      %p107 = scmp.ne.s32.totalorder %s90, %s106
      %p108 = scmp.eq.s32.totalorder %s18, 0
      %p109 = por %p107, %p108
      %s110 = ssub.s32 %s19, %s31
      %p111 = scmp.eq.s32.totalorder %s110, 0
      %s113 = sadd.s32 %s112, 1
      %s114 = scalar_select %p111, %s112, %s113
      %p117 = pneg %p111
      %p118 = scmp.eq.s32.totalorder %s12, 3
      %p119 = por %p117, %p118
      %p120 = scmp.ne.s32.totalorder %s112, %s115
      %p121 = scmp.eq.s32.totalorder %s12, 0
      %p122 = por %p120, %p121
      %p123 = scmp.ne.s32.totalorder %s112, %s115
      %p124 = scmp.eq.s32.totalorder %s17, 3
      %p125 = por %p123, %p124
      %p126 = scmp.ne.s32.totalorder %s115, %s116
      %p127 = scmp.eq.s32.totalorder %s17, 0
      %p128 = por %p126, %p127
      %p129 = scmp.ne.s32.totalorder %s115, %s116
      %p130 = scmp.eq.s32.totalorder %s18, 3
      %p131 = por %p129, %p130
      %p133 = scmp.ne.s32.totalorder %s116, %s132
      %p134 = scmp.eq.s32.totalorder %s18, 0
      %p135 = por %p133, %p134
      %p136 = scmp.le.s32.totalorder 1, %s12
      %p137 = scmp.lt.s32.totalorder %s12, 5
      %p138 = pnand %p136, %p137
      %p139 = pneg %p138
      // Predicated region
      $region9: #{cohere_mlp.1} parent=5 // pred_check
        _
      $region10: #{cohere_mlp.1} parent=5 // pred_check_branch
        %141 = sbr.rel (%p138) target = $region12
      $region11: #{cohere_mlp.1} parent=5 // pred_region
        %s142 = ssub.s32 %s12, 1
      $region12: #{cohere_mlp.1} parent=5 // pred_fallthru
        _
      %p143 = scmp.lt.s32.totalorder %s12, 4
      // Predicated region
      $region13: #{cohere_mlp.1} parent=5 // pred_check
        %p144 = pneg %p143
      $region14: #{cohere_mlp.1} parent=5 // pred_check_branch
        %146 = sbr.rel (%p144) target = $region16
      $region15: #{cohere_mlp.1} parent=5 // pred_region
        // Predicated region
        $region17: #{cohere_mlp.1} parent=15 // pred_check
          %p147 = pneg %p44
        $region18: #{cohere_mlp.1} parent=15 // pred_check_branch
          %149 = sbr.rel (%p147) target = $region20
        $region19: #{cohere_mlp.1} parent=15 // pred_region
          %s150 = smul.u32 16, %s19
          %p151 = scmp.lt.s32.totalorder %s150, 31
          %s152 = scalar_select %p151, %s150, 31
          %s153 = smul.addr %s152, 2
          %s154 = smul.addr %s153, 4
          %s155 = scalar_lea.vmem %s0, %s154
          %s156 = smul.u32 16, %s19
        $region20: #{cohere_mlp.1} parent=15 // pred_fallthru
          _
        // Predicated region
        $region21: #{cohere_mlp.1} parent=15 // pred_check
          %p157 = pneg %p70
        $region22: #{cohere_mlp.1} parent=15 // pred_check_branch
          %159 = sbr.rel (%p157) target = $region24
        $region23: #{cohere_mlp.1} parent=15 // pred_region
          %s160 = sand.u32 %s60, 1
          %s161 = sand.u32 %s60, 1
          %s162 = smul.addr %s161, 512
          %s163 = scalar_lea.vmem [#allocation3], %s162
          %s164 = smul.u32 4, %s20
          %s165 = smul.addr %s164, 4
          %s166 = scalar_lea.vmem %s1, %s165
          // Predicated region
          $region25: #{cohere_mlp.1} parent=23 // pred_check
            _
          $region26: #{cohere_mlp.1} parent=23 // pred_check_branch
            %168 = sbr.rel (0) target = $region28
          $region27: #{cohere_mlp.1} parent=23 // pred_region
            // Predicated region
            $region29: #{cohere_mlp.1} parent=27 // pred_check
              _
            $region30: #{cohere_mlp.1} parent=27 // pred_check_branch
              %170 = sbr.rel (0) target = $region32
            $region31: #{cohere_mlp.1} parent=27 // pred_region
              loop: start=0, step=1, limit=1
              $region33: #{cohere_mlp.1} parent=31 // loop_pre_header
                _
              $region34: #{cohere_mlp.1} parent=31 // loop_header
                %s172 = sphi 0, %s176
                %p173 = scmp.ge.s32.totalorder %s172, 1
                %s177 = sphi %s166, %s166
                %s178 = sphi %s163, %s163
              $region35: #{cohere_mlp.1} parent=31 // loop_header_branch
                %175 = sbr.rel (%p173) target = $region39
              $region36: #{cohere_mlp.1} parent=31 // loop_body
                %v179 = vld [vmem:[%s177] sm:$0xff]
                %180 = vst [vmem:[%s178] sm:$0xff] %v179
                %v181 = vld [vmem:[%s177 + $0x8] sm:$0xff]
                %182 = vst [vmem:[%s178 + $0x8] sm:$0xff] %v181
                %v183 = vld [vmem:[%s177 + $0x20] sm:$0xff]
                %184 = vst [vmem:[%s178 + $0x10] sm:$0xff] %v183
                %v185 = vld [vmem:[%s177 + $0x28] sm:$0xff]
                %186 = vst [vmem:[%s178 + $0x18] sm:$0xff] %v185
                %v187 = vld [vmem:[%s177 + $0x40] sm:$0xff]
                %188 = vst [vmem:[%s178 + $0x20] sm:$0xff] %v187
                %v189 = vld [vmem:[%s177 + $0x48] sm:$0xff]
                %190 = vst [vmem:[%s178 + $0x28] sm:$0xff] %v189
                %v191 = vld [vmem:[%s177 + $0x60] sm:$0xff]
                %192 = vst [vmem:[%s178 + $0x30] sm:$0xff] %v191
                %v193 = vld [vmem:[%s177 + $0x68] sm:$0xff]
                %194 = vst [vmem:[%s178 + $0x38] sm:$0xff] %v193
                %v195 = vld [vmem:[%s177 + $0x80] sm:$0xff]
                %196 = vst [vmem:[%s178 + $0x40] sm:$0xff] %v195
                %v197 = vld [vmem:[%s177 + $0x88] sm:$0xff]
                %198 = vst [vmem:[%s178 + $0x48] sm:$0xff] %v197
                %v199 = vld [vmem:[%s177 + $0xa0] sm:$0xff]
                %200 = vst [vmem:[%s178 + $0x50] sm:$0xff] %v199
                %v201 = vld [vmem:[%s177 + $0xa8] sm:$0xff]
                %202 = vst [vmem:[%s178 + $0x58] sm:$0xff] %v201
                %v203 = vld [vmem:[%s177 + $0xc0] sm:$0xff]
                %204 = vst [vmem:[%s178 + $0x60] sm:$0xff] %v203
                %v205 = vld [vmem:[%s177 + $0xc8] sm:$0xff]
                %206 = vst [vmem:[%s178 + $0x68] sm:$0xff] %v205
                %v207 = vld [vmem:[%s177 + $0xe0] sm:$0xff]
                %208 = vst [vmem:[%s178 + $0x70] sm:$0xff] %v207
                %v209 = vld [vmem:[%s177 + $0xe8] sm:$0xff]
                %210 = vst [vmem:[%s178 + $0x78] sm:$0xff] %v209
                %v211 = vld [vmem:[%s177 + $0x100] sm:$0xff]
                %212 = vst [vmem:[%s178 + $0x80] sm:$0xff] %v211
                %v213 = vld [vmem:[%s177 + $0x108] sm:$0xff]
                %214 = vst [vmem:[%s178 + $0x88] sm:$0xff] %v213
                %v215 = vld [vmem:[%s177 + $0x120] sm:$0xff]
                %216 = vst [vmem:[%s178 + $0x90] sm:$0xff] %v215
                %v217 = vld [vmem:[%s177 + $0x128] sm:$0xff]
                %218 = vst [vmem:[%s178 + $0x98] sm:$0xff] %v217
                %v219 = vld [vmem:[%s177 + $0x140] sm:$0xff]
                %220 = vst [vmem:[%s178 + $0xa0] sm:$0xff] %v219
                %v221 = vld [vmem:[%s177 + $0x148] sm:$0xff]
                %222 = vst [vmem:[%s178 + $0xa8] sm:$0xff] %v221
                %v223 = vld [vmem:[%s177 + $0x160] sm:$0xff]
                %224 = vst [vmem:[%s178 + $0xb0] sm:$0xff] %v223
                %v225 = vld [vmem:[%s177 + $0x168] sm:$0xff]
                %226 = vst [vmem:[%s178 + $0xb8] sm:$0xff] %v225
                %v227 = vld [vmem:[%s177 + $0x180] sm:$0xff]
                %228 = vst [vmem:[%s178 + $0xc0] sm:$0xff] %v227
                %v229 = vld [vmem:[%s177 + $0x188] sm:$0xff]
                %230 = vst [vmem:[%s178 + $0xc8] sm:$0xff] %v229
                %v231 = vld [vmem:[%s177 + $0x1a0] sm:$0xff]
                %232 = vst [vmem:[%s178 + $0xd0] sm:$0xff] %v231
                %v233 = vld [vmem:[%s177 + $0x1a8] sm:$0xff]
                %234 = vst [vmem:[%s178 + $0xd8] sm:$0xff] %v233
                %v235 = vld [vmem:[%s177 + $0x1c0] sm:$0xff]
                %236 = vst [vmem:[%s178 + $0xe0] sm:$0xff] %v235
                %v237 = vld [vmem:[%s177 + $0x1c8] sm:$0xff]
                %238 = vst [vmem:[%s178 + $0xe8] sm:$0xff] %v237
                %v239 = vld [vmem:[%s177 + $0x1e0] sm:$0xff]
                %240 = vst [vmem:[%s178 + $0xf0] sm:$0xff] %v239
                %v241 = vld [vmem:[%s177 + $0x1e8] sm:$0xff]
                %242 = vst [vmem:[%s178 + $0xf8] sm:$0xff] %v241
                %v243 = vld [vmem:[%s177 + $0x200] sm:$0xff]
                %244 = vst [vmem:[%s178 + $0x100] sm:$0xff] %v243
                %v245 = vld [vmem:[%s177 + $0x208] sm:$0xff]
                %246 = vst [vmem:[%s178 + $0x108] sm:$0xff] %v245
                %v247 = vld [vmem:[%s177 + $0x220] sm:$0xff]
                %248 = vst [vmem:[%s178 + $0x110] sm:$0xff] %v247
                %v249 = vld [vmem:[%s177 + $0x228] sm:$0xff]
                %250 = vst [vmem:[%s178 + $0x118] sm:$0xff] %v249
                %v251 = vld [vmem:[%s177 + $0x240] sm:$0xff]
                %252 = vst [vmem:[%s178 + $0x120] sm:$0xff] %v251
                %v253 = vld [vmem:[%s177 + $0x248] sm:$0xff]
                %254 = vst [vmem:[%s178 + $0x128] sm:$0xff] %v253
                %v255 = vld [vmem:[%s177 + $0x260] sm:$0xff]
                %256 = vst [vmem:[%s178 + $0x130] sm:$0xff] %v255
                %v257 = vld [vmem:[%s177 + $0x268] sm:$0xff]
                %258 = vst [vmem:[%s178 + $0x138] sm:$0xff] %v257
                %v259 = vld [vmem:[%s177 + $0x280] sm:$0xff]
                %260 = vst [vmem:[%s178 + $0x140] sm:$0xff] %v259
                %v261 = vld [vmem:[%s177 + $0x288] sm:$0xff]
                %262 = vst [vmem:[%s178 + $0x148] sm:$0xff] %v261
                %v263 = vld [vmem:[%s177 + $0x2a0] sm:$0xff]
                %264 = vst [vmem:[%s178 + $0x150] sm:$0xff] %v263
                %v265 = vld [vmem:[%s177 + $0x2a8] sm:$0xff]
                %266 = vst [vmem:[%s178 + $0x158] sm:$0xff] %v265
                %v267 = vld [vmem:[%s177 + $0x2c0] sm:$0xff]
                %268 = vst [vmem:[%s178 + $0x160] sm:$0xff] %v267
                %v269 = vld [vmem:[%s177 + $0x2c8] sm:$0xff]
                %270 = vst [vmem:[%s178 + $0x168] sm:$0xff] %v269
                %v271 = vld [vmem:[%s177 + $0x2e0] sm:$0xff]
                %272 = vst [vmem:[%s178 + $0x170] sm:$0xff] %v271
                %v273 = vld [vmem:[%s177 + $0x2e8] sm:$0xff]
                %274 = vst [vmem:[%s178 + $0x178] sm:$0xff] %v273
                %v275 = vld [vmem:[%s177 + $0x300] sm:$0xff]
                %276 = vst [vmem:[%s178 + $0x180] sm:$0xff] %v275
                %v277 = vld [vmem:[%s177 + $0x308] sm:$0xff]
                %278 = vst [vmem:[%s178 + $0x188] sm:$0xff] %v277
                %v279 = vld [vmem:[%s177 + $0x320] sm:$0xff]
                %280 = vst [vmem:[%s178 + $0x190] sm:$0xff] %v279
                %v281 = vld [vmem:[%s177 + $0x328] sm:$0xff]
                %282 = vst [vmem:[%s178 + $0x198] sm:$0xff] %v281
                %v283 = vld [vmem:[%s177 + $0x340] sm:$0xff]
                %284 = vst [vmem:[%s178 + $0x1a0] sm:$0xff] %v283
                %v285 = vld [vmem:[%s177 + $0x348] sm:$0xff]
                %286 = vst [vmem:[%s178 + $0x1a8] sm:$0xff] %v285
                %v287 = vld [vmem:[%s177 + $0x360] sm:$0xff]
                %288 = vst [vmem:[%s178 + $0x1b0] sm:$0xff] %v287
                %v289 = vld [vmem:[%s177 + $0x368] sm:$0xff]
                %290 = vst [vmem:[%s178 + $0x1b8] sm:$0xff] %v289
                %v291 = vld [vmem:[%s177 + $0x380] sm:$0xff]
                %292 = vst [vmem:[%s178 + $0x1c0] sm:$0xff] %v291
                %v293 = vld [vmem:[%s177 + $0x388] sm:$0xff]
                %294 = vst [vmem:[%s178 + $0x1c8] sm:$0xff] %v293
                %v295 = vld [vmem:[%s177 + $0x3a0] sm:$0xff]
                %296 = vst [vmem:[%s178 + $0x1d0] sm:$0xff] %v295
                %v297 = vld [vmem:[%s177 + $0x3a8] sm:$0xff]
                %298 = vst [vmem:[%s178 + $0x1d8] sm:$0xff] %v297
                %v299 = vld [vmem:[%s177 + $0x3c0] sm:$0xff]
                %300 = vst [vmem:[%s178 + $0x1e0] sm:$0xff] %v299
                %v301 = vld [vmem:[%s177 + $0x3c8] sm:$0xff]
                %302 = vst [vmem:[%s178 + $0x1e8] sm:$0xff] %v301
                %v303 = vld [vmem:[%s177 + $0x3e0] sm:$0xff]
                %304 = vst [vmem:[%s178 + $0x1f0] sm:$0xff] %v303
                %v305 = vld [vmem:[%s177 + $0x3e8] sm:$0xff]
                %306 = vst [vmem:[%s178 + $0x1f8] sm:$0xff] %v305
              $region37: #{cohere_mlp.1} parent=31 // loop_footer
                %s176 = sadd.s32 1, %s172
              $region38: #{cohere_mlp.1} parent=31 // loop_footer_branch
                %171 = sbr.rel target = $region34
              $region39: #{cohere_mlp.1} parent=31 // loop_exit
                _
            $region32: #{cohere_mlp.1} parent=27 // pred_fallthru
              _
            // Predicated region
            $region40: #{cohere_mlp.1} parent=27 // pred_check
              _
            $region41: #{cohere_mlp.1} parent=27 // pred_check_branch
              %308 = sbr.rel target = $region43
            $region42: #{cohere_mlp.1} parent=27 // pred_region
              _
            $region43: #{cohere_mlp.1} parent=27 // pred_fallthru
              _
          $region28: #{cohere_mlp.1} parent=23 // pred_fallthru
            _
          %309 = vnop
        $region24: #{cohere_mlp.1} parent=15 // pred_fallthru
          _
        // Predicated region
        $region44: #{cohere_mlp.1} parent=15 // pred_check
          %p310 = pneg %p96
        $region45: #{cohere_mlp.1} parent=15 // pred_check_branch
          %312 = sbr.rel (%p310) target = $region47
        $region46: #{cohere_mlp.1} parent=15 // pred_region
          %s313 = smul.u32 32, %s20
          %p314 = scmp.lt.s32.totalorder %s313, 63
          %s315 = scalar_select %p314, %s313, 63
          %s316 = smul.addr %s315, 2
          %s317 = smul.addr %s316, 4
          %s318 = scalar_lea.vmem %s2, %s317
          %s319 = smul.u32 32, %s20
        $region47: #{cohere_mlp.1} parent=15 // pred_fallthru
          _
      $region16: #{cohere_mlp.1} parent=5 // pred_fallthru
        _
      %p320 = scmp.le.s32.totalorder 1, %s12
      %p321 = scmp.lt.s32.totalorder %s12, 5
      %p322 = pnand %p320, %p321
      %p323 = pneg %p322
      // Predicated region
      $region48: #{cohere_mlp.1} parent=5 // pred_check
        _
      $region49: #{cohere_mlp.1} parent=5 // pred_check_branch
        %325 = sbr.rel (%p322) target = $region51
      $region50: #{cohere_mlp.1} parent=5 // pred_region
        %s326 = ssub.s32 %s12, 1
        %s327 = sand.u32 %s63, 1
        %s328 = sand.u32 %s63, 1
        %s329 = smul.addr %s328, 512
        %s330 = scalar_lea.vmem [#allocation3], %s329
        // Predicated region
        $region52: #{cohere_mlp.1} parent=50 // pred_check
          %p331 = pneg %p76
        $region53: #{cohere_mlp.1} parent=50 // pred_check_branch
          %333 = sbr.rel (%p331) target = $region55
        $region54: #{cohere_mlp.1} parent=50 // pred_region
          _
        $region55: #{cohere_mlp.1} parent=50 // pred_fallthru
          _
        %s334 = smul.u32 16, %s21
        %p335 = scmp.lt.s32.totalorder %s334, 31
        %s336 = scalar_select %p335, %s334, 31
        %s337 = smul.addr %s336, 2
        %s338 = smul.addr %s337, 4
        %s339 = scalar_lea.vmem %s0, %s338
        %p340 = pneg %p50
        %p341 = pneg %p47
        %s342 = sand.u32 %s63, 1
        %s343 = sand.u32 %s63, 1
        %s344 = smul.addr %s343, 512
        %s345 = scalar_lea.vmem [#allocation3], %s344
        %p346 = pneg %p76
        %p347 = pneg %p73
        %s348 = smul.u32 32, %s22
        %p349 = scmp.lt.s32.totalorder %s348, 63
        %s350 = scalar_select %p349, %s348, 63
        %s351 = smul.addr %s350, 2
        %s352 = smul.addr %s351, 4
        %s353 = scalar_lea.vmem %s2, %s352
        %p354 = pneg %p102
        %p355 = pneg %p99
        %p356 = pneg %p128
        %p357 = pneg %p125
        %s358 = sand.u32 %s115, 1
        %s359 = scalar_lea.sflag [#allocation5], %s358
        %s360 = sand.u32 %s115, 1
        %s361 = smul.addr %s360, 128
        %s362 = scalar_lea.vmem [#allocation4], %s361
        %s363 = smul.u32 16, %s21
        %p364 = scmp.lt.s32.totalorder %s363, 31
        %s365 = scalar_select %p364, %s363, 31
        %s366 = smul.addr %s365, 2
        %s367 = smul.addr %s366, 4
        %s368 = scalar_lea.vmem %s0, %s367
        %s369 = smul.u32 16, %s21
        %s370 = smul.u32 4, %s22
        %s371 = smul.u32 32, %s22
        %p372 = scmp.lt.s32.totalorder %s371, 63
        %s373 = scalar_select %p372, %s371, 63
        %s374 = smul.addr %s373, 2
        %s375 = smul.addr %s374, 4
        %s376 = scalar_lea.vmem %s2, %s375
        %s377 = smul.u32 32, %s22
        %s378 = smul.u32 16, %s21
        %p379 = scmp.eq.s32.totalorder %s22, 0
        // Predicated region
        $region56: #{cohere_mlp.1} parent=50 // pred_check
          %p380 = pneg %p379
        $region57: #{cohere_mlp.1} parent=50 // pred_check_branch
          %382 = sbr.rel (%p380) target = $region59
        $region58: #{cohere_mlp.1} parent=50 // pred_region
          %383 = vst [vmem:[#allocation2] sm:$0xff] 0.0
          %384 = vst [vmem:[#allocation2 + $0x8] sm:$0xff] 0.0
          %385 = vst [vmem:[#allocation2 + $0x10] sm:$0xff] 0.0
          %386 = vst [vmem:[#allocation2 + $0x18] sm:$0xff] 0.0
          %387 = vst [vmem:[#allocation2 + $0x20] sm:$0xff] 0.0
          %388 = vst [vmem:[#allocation2 + $0x28] sm:$0xff] 0.0
          %389 = vst [vmem:[#allocation2 + $0x30] sm:$0xff] 0.0
          %390 = vst [vmem:[#allocation2 + $0x38] sm:$0xff] 0.0
          %391 = vst [vmem:[#allocation2 + $0x40] sm:$0xff] 0.0
          %392 = vst [vmem:[#allocation2 + $0x48] sm:$0xff] 0.0
          %393 = vst [vmem:[#allocation2 + $0x50] sm:$0xff] 0.0
          %394 = vst [vmem:[#allocation2 + $0x58] sm:$0xff] 0.0
          %395 = vst [vmem:[#allocation2 + $0x60] sm:$0xff] 0.0
          %396 = vst [vmem:[#allocation2 + $0x68] sm:$0xff] 0.0
          %397 = vst [vmem:[#allocation2 + $0x70] sm:$0xff] 0.0
          %398 = vst [vmem:[#allocation2 + $0x78] sm:$0xff] 0.0
          %399 = vst [vmem:[#allocation2 + $0x80] sm:$0xff] 0.0
          %400 = vst [vmem:[#allocation2 + $0x88] sm:$0xff] 0.0
          %401 = vst [vmem:[#allocation2 + $0x90] sm:$0xff] 0.0
          %402 = vst [vmem:[#allocation2 + $0x98] sm:$0xff] 0.0
          %403 = vst [vmem:[#allocation2 + $0xa0] sm:$0xff] 0.0
          %404 = vst [vmem:[#allocation2 + $0xa8] sm:$0xff] 0.0
          %405 = vst [vmem:[#allocation2 + $0xb0] sm:$0xff] 0.0
          %406 = vst [vmem:[#allocation2 + $0xb8] sm:$0xff] 0.0
          %407 = vst [vmem:[#allocation2 + $0xc0] sm:$0xff] 0.0
          %408 = vst [vmem:[#allocation2 + $0xc8] sm:$0xff] 0.0
          %409 = vst [vmem:[#allocation2 + $0xd0] sm:$0xff] 0.0
          %410 = vst [vmem:[#allocation2 + $0xd8] sm:$0xff] 0.0
          %411 = vst [vmem:[#allocation2 + $0xe0] sm:$0xff] 0.0
          %412 = vst [vmem:[#allocation2 + $0xe8] sm:$0xff] 0.0
          %413 = vst [vmem:[#allocation2 + $0xf0] sm:$0xff] 0.0
          %414 = vst [vmem:[#allocation2 + $0xf8] sm:$0xff] 0.0
        $region59: #{cohere_mlp.1} parent=50 // pred_fallthru
          _
        %v415 = vld [vmem:[%s368] sm:$0xff]
        %v416 = vld [vmem:[%s368 + $0x8] sm:$0xff]
        %v417 = vld [vmem:[%s368 + $0x10] sm:$0xff]
        %v418 = vld [vmem:[%s368 + $0x18] sm:$0xff]
        %v419 = vld [vmem:[%s368 + $0x20] sm:$0xff]
        %v420 = vld [vmem:[%s368 + $0x28] sm:$0xff]
        %v421 = vld [vmem:[%s368 + $0x30] sm:$0xff]
        %v422 = vld [vmem:[%s368 + $0x38] sm:$0xff]
        %v423 = vld [vmem:[%s368 + $0x40] sm:$0xff]
        %v424 = vld [vmem:[%s368 + $0x48] sm:$0xff]
        %v425 = vld [vmem:[%s368 + $0x50] sm:$0xff]
        %v426 = vld [vmem:[%s368 + $0x58] sm:$0xff]
        %v427 = vld [vmem:[%s368 + $0x60] sm:$0xff]
        %v428 = vld [vmem:[%s368 + $0x68] sm:$0xff]
        %v429 = vld [vmem:[%s368 + $0x70] sm:$0xff]
        %v430 = vld [vmem:[%s368 + $0x78] sm:$0xff]
        %v431 = vld [vmem:[%s330] sm:$0xff]
        %v432 = vld [vmem:[%s330 + $0x8] sm:$0xff]
        %v433 = vld [vmem:[%s330 + $0x10] sm:$0xff]
        %v434 = vld [vmem:[%s330 + $0x18] sm:$0xff]
        %v435 = vld [vmem:[%s330 + $0x20] sm:$0xff]
        %v436 = vld [vmem:[%s330 + $0x28] sm:$0xff]
        %v437 = vld [vmem:[%s330 + $0x30] sm:$0xff]
        %v438 = vld [vmem:[%s330 + $0x38] sm:$0xff]
        %v439 = vld [vmem:[%s330 + $0x40] sm:$0xff]
        %v440 = vld [vmem:[%s330 + $0x48] sm:$0xff]
        %v441 = vld [vmem:[%s330 + $0x50] sm:$0xff]
        %v442 = vld [vmem:[%s330 + $0x58] sm:$0xff]
        %v443 = vld [vmem:[%s330 + $0x60] sm:$0xff]
        %v444 = vld [vmem:[%s330 + $0x68] sm:$0xff]
        %v445 = vld [vmem:[%s330 + $0x70] sm:$0xff]
        %v446 = vld [vmem:[%s330 + $0x78] sm:$0xff]
        %v447 = vld [vmem:[%s330 + $0x80] sm:$0xff]
        %v448 = vld [vmem:[%s330 + $0x88] sm:$0xff]
        %v449 = vld [vmem:[%s330 + $0x90] sm:$0xff]
        %v450 = vld [vmem:[%s330 + $0x98] sm:$0xff]
        %v451 = vld [vmem:[%s330 + $0xa0] sm:$0xff]
        %v452 = vld [vmem:[%s330 + $0xa8] sm:$0xff]
        %v453 = vld [vmem:[%s330 + $0xb0] sm:$0xff]
        %v454 = vld [vmem:[%s330 + $0xb8] sm:$0xff]
        %v455 = vld [vmem:[%s330 + $0xc0] sm:$0xff]
        %v456 = vld [vmem:[%s330 + $0xc8] sm:$0xff]
        %v457 = vld [vmem:[%s330 + $0xd0] sm:$0xff]
        %v458 = vld [vmem:[%s330 + $0xd8] sm:$0xff]
        %v459 = vld [vmem:[%s330 + $0xe0] sm:$0xff]
        %v460 = vld [vmem:[%s330 + $0xe8] sm:$0xff]
        %v461 = vld [vmem:[%s330 + $0xf0] sm:$0xff]
        %v462 = vld [vmem:[%s330 + $0xf8] sm:$0xff]
        %v463 = vld [vmem:[%s330 + $0x100] sm:$0xff]
        %v464 = vld [vmem:[%s330 + $0x108] sm:$0xff]
        %v465 = vld [vmem:[%s330 + $0x110] sm:$0xff]
        %v466 = vld [vmem:[%s330 + $0x118] sm:$0xff]
        %v467 = vld [vmem:[%s330 + $0x120] sm:$0xff]
        %v468 = vld [vmem:[%s330 + $0x128] sm:$0xff]
        %v469 = vld [vmem:[%s330 + $0x130] sm:$0xff]
        %v470 = vld [vmem:[%s330 + $0x138] sm:$0xff]
        %v471 = vld [vmem:[%s330 + $0x140] sm:$0xff]
        %v472 = vld [vmem:[%s330 + $0x148] sm:$0xff]
        %v473 = vld [vmem:[%s330 + $0x150] sm:$0xff]
        %v474 = vld [vmem:[%s330 + $0x158] sm:$0xff]
        %v475 = vld [vmem:[%s330 + $0x160] sm:$0xff]
        %v476 = vld [vmem:[%s330 + $0x168] sm:$0xff]
        %v477 = vld [vmem:[%s330 + $0x170] sm:$0xff]
        %v478 = vld [vmem:[%s330 + $0x178] sm:$0xff]
        %v479 = vld [vmem:[%s330 + $0x180] sm:$0xff]
        %v480 = vld [vmem:[%s330 + $0x188] sm:$0xff]
        %v481 = vld [vmem:[%s330 + $0x190] sm:$0xff]
        %v482 = vld [vmem:[%s330 + $0x198] sm:$0xff]
        %v483 = vld [vmem:[%s330 + $0x1a0] sm:$0xff]
        %v484 = vld [vmem:[%s330 + $0x1a8] sm:$0xff]
        %v485 = vld [vmem:[%s330 + $0x1b0] sm:$0xff]
        %v486 = vld [vmem:[%s330 + $0x1b8] sm:$0xff]
        %v487 = vld [vmem:[%s330 + $0x1c0] sm:$0xff]
        %v488 = vld [vmem:[%s330 + $0x1c8] sm:$0xff]
        %v489 = vld [vmem:[%s330 + $0x1d0] sm:$0xff]
        %v490 = vld [vmem:[%s330 + $0x1d8] sm:$0xff]
        %v491 = vld [vmem:[%s330 + $0x1e0] sm:$0xff]
        %v492 = vld [vmem:[%s330 + $0x1e8] sm:$0xff]
        %v493 = vld [vmem:[%s330 + $0x1f0] sm:$0xff]
        %v494 = vld [vmem:[%s330 + $0x1f8] sm:$0xff]
        %v511 = vunpack.c.l.b16 %v415
        %v512 = vunpack.c.h.b16 %v415
        %v513 = vunpack.c.l.b16 %v416
        %v514 = vunpack.c.h.b16 %v416
        %v515 = vunpack.c.l.b16 %v417
        %v516 = vunpack.c.h.b16 %v417
        %v517 = vunpack.c.l.b16 %v418
        %v518 = vunpack.c.h.b16 %v418
        %v519 = vunpack.c.l.b16 %v419
        %v520 = vunpack.c.h.b16 %v419
        %v521 = vunpack.c.l.b16 %v420
        %v522 = vunpack.c.h.b16 %v420
        %v523 = vunpack.c.l.b16 %v421
        %v524 = vunpack.c.h.b16 %v421
        %v525 = vunpack.c.l.b16 %v422
        %v526 = vunpack.c.h.b16 %v422
        %v527 = vunpack.c.l.b16 %v423
        %v528 = vunpack.c.h.b16 %v423
        %v529 = vunpack.c.l.b16 %v424
        %v530 = vunpack.c.h.b16 %v424
        %v531 = vunpack.c.l.b16 %v425
        %v532 = vunpack.c.h.b16 %v425
        %v533 = vunpack.c.l.b16 %v426
        %v534 = vunpack.c.h.b16 %v426
        %v535 = vunpack.c.l.b16 %v427
        %v536 = vunpack.c.h.b16 %v427
        %v537 = vunpack.c.l.b16 %v428
        %v538 = vunpack.c.h.b16 %v428
        %v539 = vunpack.c.l.b16 %v429
        %v540 = vunpack.c.h.b16 %v429
        %v541 = vunpack.c.l.b16 %v430
        %v542 = vunpack.c.h.b16 %v430
        %v543 = vpack.c.b16 %v513, %v511
        %v544 = vpack.c.b16 %v514, %v512
        %v545 = vpack.c.b16 %v517, %v515
        %v546 = vpack.c.b16 %v518, %v516
        %v547 = vpack.c.b16 %v521, %v519
        %v548 = vpack.c.b16 %v522, %v520
        %v549 = vpack.c.b16 %v525, %v523
        %v550 = vpack.c.b16 %v526, %v524
        %v551 = vpack.c.b16 %v529, %v527
        %v552 = vpack.c.b16 %v530, %v528
        %v553 = vpack.c.b16 %v533, %v531
        %v554 = vpack.c.b16 %v534, %v532
        %v555 = vpack.c.b16 %v537, %v535
        %v556 = vpack.c.b16 %v538, %v536
        %v557 = vpack.c.b16 %v541, %v539
        %v558 = vpack.c.b16 %v542, %v540
        %v639 = vunpack.c.l.b16 %v431
        %v640 = vunpack.c.h.b16 %v431
        %v641 = vunpack.c.l.b16 %v432
        %v642 = vunpack.c.h.b16 %v432
        %v643 = vunpack.c.l.b16 %v433
        %v644 = vunpack.c.h.b16 %v433
        %v645 = vunpack.c.l.b16 %v434
        %v646 = vunpack.c.h.b16 %v434
        %v647 = vunpack.c.l.b16 %v435
        %v648 = vunpack.c.h.b16 %v435
        %v649 = vunpack.c.l.b16 %v436
        %v650 = vunpack.c.h.b16 %v436
        %v651 = vunpack.c.l.b16 %v437
        %v652 = vunpack.c.h.b16 %v437
        %v653 = vunpack.c.l.b16 %v438
        %v654 = vunpack.c.h.b16 %v438
        %v655 = vunpack.c.l.b16 %v439
        %v656 = vunpack.c.h.b16 %v439
        %v657 = vunpack.c.l.b16 %v440
        %v658 = vunpack.c.h.b16 %v440
        %v659 = vunpack.c.l.b16 %v441
        %v660 = vunpack.c.h.b16 %v441
        %v661 = vunpack.c.l.b16 %v442
        %v662 = vunpack.c.h.b16 %v442
        %v663 = vunpack.c.l.b16 %v443
        %v664 = vunpack.c.h.b16 %v443
        %v665 = vunpack.c.l.b16 %v444
        %v666 = vunpack.c.h.b16 %v444
        %v667 = vunpack.c.l.b16 %v445
        %v668 = vunpack.c.h.b16 %v445
        %v669 = vunpack.c.l.b16 %v446
        %v670 = vunpack.c.h.b16 %v446
        %v671 = vunpack.c.l.b16 %v447
        %v672 = vunpack.c.h.b16 %v447
        %v673 = vunpack.c.l.b16 %v448
        %v674 = vunpack.c.h.b16 %v448
        %v675 = vunpack.c.l.b16 %v449
        %v676 = vunpack.c.h.b16 %v449
        %v677 = vunpack.c.l.b16 %v450
        %v678 = vunpack.c.h.b16 %v450
        %v679 = vunpack.c.l.b16 %v451
        %v680 = vunpack.c.h.b16 %v451
        %v681 = vunpack.c.l.b16 %v452
        %v682 = vunpack.c.h.b16 %v452
        %v683 = vunpack.c.l.b16 %v453
        %v684 = vunpack.c.h.b16 %v453
        %v685 = vunpack.c.l.b16 %v454
        %v686 = vunpack.c.h.b16 %v454
        %v687 = vunpack.c.l.b16 %v455
        %v688 = vunpack.c.h.b16 %v455
        %v689 = vunpack.c.l.b16 %v456
        %v690 = vunpack.c.h.b16 %v456
        %v691 = vunpack.c.l.b16 %v457
        %v692 = vunpack.c.h.b16 %v457
        %v693 = vunpack.c.l.b16 %v458
        %v694 = vunpack.c.h.b16 %v458
        %v695 = vunpack.c.l.b16 %v459
        %v696 = vunpack.c.h.b16 %v459
        %v697 = vunpack.c.l.b16 %v460
        %v698 = vunpack.c.h.b16 %v460
        %v699 = vunpack.c.l.b16 %v461
        %v700 = vunpack.c.h.b16 %v461
        %v701 = vunpack.c.l.b16 %v462
        %v702 = vunpack.c.h.b16 %v462
        %v703 = vunpack.c.l.b16 %v463
        %v704 = vunpack.c.h.b16 %v463
        %v705 = vunpack.c.l.b16 %v464
        %v706 = vunpack.c.h.b16 %v464
        %v707 = vunpack.c.l.b16 %v465
        %v708 = vunpack.c.h.b16 %v465
        %v709 = vunpack.c.l.b16 %v466
        %v710 = vunpack.c.h.b16 %v466
        %v711 = vunpack.c.l.b16 %v467
        %v712 = vunpack.c.h.b16 %v467
        %v713 = vunpack.c.l.b16 %v468
        %v714 = vunpack.c.h.b16 %v468
        %v715 = vunpack.c.l.b16 %v469
        %v716 = vunpack.c.h.b16 %v469
        %v717 = vunpack.c.l.b16 %v470
        %v718 = vunpack.c.h.b16 %v470
        %v719 = vunpack.c.l.b16 %v471
        %v720 = vunpack.c.h.b16 %v471
        %v721 = vunpack.c.l.b16 %v472
        %v722 = vunpack.c.h.b16 %v472
        %v723 = vunpack.c.l.b16 %v473
        %v724 = vunpack.c.h.b16 %v473
        %v725 = vunpack.c.l.b16 %v474
        %v726 = vunpack.c.h.b16 %v474
        %v727 = vunpack.c.l.b16 %v475
        %v728 = vunpack.c.h.b16 %v475
        %v729 = vunpack.c.l.b16 %v476
        %v730 = vunpack.c.h.b16 %v476
        %v731 = vunpack.c.l.b16 %v477
        %v732 = vunpack.c.h.b16 %v477
        %v733 = vunpack.c.l.b16 %v478
        %v734 = vunpack.c.h.b16 %v478
        %v735 = vunpack.c.l.b16 %v479
        %v736 = vunpack.c.h.b16 %v479
        %v737 = vunpack.c.l.b16 %v480
        %v738 = vunpack.c.h.b16 %v480
        %v739 = vunpack.c.l.b16 %v481
        %v740 = vunpack.c.h.b16 %v481
        %v741 = vunpack.c.l.b16 %v482
        %v742 = vunpack.c.h.b16 %v482
        %v743 = vunpack.c.l.b16 %v483
        %v744 = vunpack.c.h.b16 %v483
        %v745 = vunpack.c.l.b16 %v484
        %v746 = vunpack.c.h.b16 %v484
        %v747 = vunpack.c.l.b16 %v485
        %v748 = vunpack.c.h.b16 %v485
        %v749 = vunpack.c.l.b16 %v486
        %v750 = vunpack.c.h.b16 %v486
        %v751 = vunpack.c.l.b16 %v487
        %v752 = vunpack.c.h.b16 %v487
        %v753 = vunpack.c.l.b16 %v488
        %v754 = vunpack.c.h.b16 %v488
        %v755 = vunpack.c.l.b16 %v489
        %v756 = vunpack.c.h.b16 %v489
        %v757 = vunpack.c.l.b16 %v490
        %v758 = vunpack.c.h.b16 %v490
        %v759 = vunpack.c.l.b16 %v491
        %v760 = vunpack.c.h.b16 %v491
        %v761 = vunpack.c.l.b16 %v492
        %v762 = vunpack.c.h.b16 %v492
        %v763 = vunpack.c.l.b16 %v493
        %v764 = vunpack.c.h.b16 %v493
        %v765 = vunpack.c.l.b16 %v494
        %v766 = vunpack.c.h.b16 %v494
        %v767 = vpack.c.b16 %v643, %v639
        %v768 = vpack.c.b16 %v644, %v640
        %v769 = vpack.c.b16 %v645, %v641
        %v770 = vpack.c.b16 %v646, %v642
        %v771 = vpack.c.b16 %v651, %v647
        %v772 = vpack.c.b16 %v652, %v648
        %v773 = vpack.c.b16 %v653, %v649
        %v774 = vpack.c.b16 %v654, %v650
        %v775 = vpack.c.b16 %v659, %v655
        %v776 = vpack.c.b16 %v660, %v656
        %v777 = vpack.c.b16 %v661, %v657
        %v778 = vpack.c.b16 %v662, %v658
        %v779 = vpack.c.b16 %v667, %v663
        %v780 = vpack.c.b16 %v668, %v664
        %v781 = vpack.c.b16 %v669, %v665
        %v782 = vpack.c.b16 %v670, %v666
        %v783 = vpack.c.b16 %v675, %v671
        %v784 = vpack.c.b16 %v676, %v672
        %v785 = vpack.c.b16 %v677, %v673
        %v786 = vpack.c.b16 %v678, %v674
        %v787 = vpack.c.b16 %v683, %v679
        %v788 = vpack.c.b16 %v684, %v680
        %v789 = vpack.c.b16 %v685, %v681
        %v790 = vpack.c.b16 %v686, %v682
        %v791 = vpack.c.b16 %v691, %v687
        %v792 = vpack.c.b16 %v692, %v688
        %v793 = vpack.c.b16 %v693, %v689
        %v794 = vpack.c.b16 %v694, %v690
        %v795 = vpack.c.b16 %v699, %v695
        %v796 = vpack.c.b16 %v700, %v696
        %v797 = vpack.c.b16 %v701, %v697
        %v798 = vpack.c.b16 %v702, %v698
        %v799 = vpack.c.b16 %v707, %v703
        %v800 = vpack.c.b16 %v708, %v704
        %v801 = vpack.c.b16 %v709, %v705
        %v802 = vpack.c.b16 %v710, %v706
        %v803 = vpack.c.b16 %v715, %v711
        %v804 = vpack.c.b16 %v716, %v712
        %v805 = vpack.c.b16 %v717, %v713
        %v806 = vpack.c.b16 %v718, %v714
        %v807 = vpack.c.b16 %v723, %v719
        %v808 = vpack.c.b16 %v724, %v720
        %v809 = vpack.c.b16 %v725, %v721
        %v810 = vpack.c.b16 %v726, %v722
        %v811 = vpack.c.b16 %v731, %v727
        %v812 = vpack.c.b16 %v732, %v728
        %v813 = vpack.c.b16 %v733, %v729
        %v814 = vpack.c.b16 %v734, %v730
        %v815 = vpack.c.b16 %v739, %v735
        %v816 = vpack.c.b16 %v740, %v736
        %v817 = vpack.c.b16 %v741, %v737
        %v818 = vpack.c.b16 %v742, %v738
        %v819 = vpack.c.b16 %v747, %v743
        %v820 = vpack.c.b16 %v748, %v744
        %v821 = vpack.c.b16 %v749, %v745
        %v822 = vpack.c.b16 %v750, %v746
        %v823 = vpack.c.b16 %v755, %v751
        %v824 = vpack.c.b16 %v756, %v752
        %v825 = vpack.c.b16 %v757, %v753
        %v826 = vpack.c.b16 %v758, %v754
        %v827 = vpack.c.b16 %v763, %v759
        %v828 = vpack.c.b16 %v764, %v760
        %v829 = vpack.c.b16 %v765, %v761
        %v830 = vpack.c.b16 %v766, %v762
        %895 = vmatprep.subr.bf16.mxu0 %v768
        %896 = vmatpush1.bf16.msra.mxu0 %v767
        %897 = vmatprep.subr.bf16.mxu0 %v772
        %898 = vmatpush1.bf16.msra.mxu0 %v771
        %899 = vmatprep.subr.bf16.mxu0 %v776
        %900 = vmatpush1.bf16.msra.mxu0 %v775
        %901 = vmatprep.subr.bf16.mxu0 %v780
        %902 = vmatpush1.bf16.msra.mxu0 %v779
        %903 = vmatprep.subr.bf16.mxu0 %v784
        %904 = vmatpush1.bf16.msra.mxu0 %v783
        %905 = vmatprep.subr.bf16.mxu0 %v788
        %906 = vmatpush1.bf16.msra.mxu0 %v787
        %907 = vmatprep.subr.bf16.mxu0 %v792
        %908 = vmatpush1.bf16.msra.mxu0 %v791
        %909 = vmatprep.subr.bf16.mxu0 %v796
        %910 = vmatpush1.bf16.msra.mxu0 %v795
        %911 = vmatprep.subr.bf16.mxu0 %v800
        %912 = vmatpush1.bf16.msra.mxu0 %v799
        %913 = vmatprep.subr.bf16.mxu0 %v804
        %914 = vmatpush1.bf16.msra.mxu0 %v803
        %915 = vmatprep.subr.bf16.mxu0 %v808
        %916 = vmatpush1.bf16.msra.mxu0 %v807
        %917 = vmatprep.subr.bf16.mxu0 %v812
        %918 = vmatpush1.bf16.msra.mxu0 %v811
        %919 = vmatprep.subr.bf16.mxu0 %v816
        %920 = vmatpush1.bf16.msra.mxu0 %v815
        %921 = vmatprep.subr.bf16.mxu0 %v820
        %922 = vmatpush1.bf16.msra.mxu0 %v819
        %923 = vmatprep.subr.bf16.mxu0 %v824
        %924 = vmatpush1.bf16.msra.mxu0 %v823
        %925 = vmatprep.subr.bf16.mxu0 %v828
        %926 = vmatpush1.bf16.msra.mxu0 %v827
        %927 = vmatprep.mubr.bf16.mxu0 %v544
        %928 = vmatmul.mubr.bf16.gmra.mrb[0].mxu0 %v543
        %v929 = vpop.f32.mrb[0].mxu0
        %v930 = vadd.f32 0.0, %v929
        %v931 = vpop.f32.mrb[0].mxu0
        %v932 = vadd.f32 0.0, %v931
        %v933 = vpop.f32.mrb[0].mxu0
        %v934 = vadd.f32 0.0, %v933
        %v935 = vpop.f32.mrb[0].mxu0
        %v936 = vadd.f32 0.0, %v935
        %937 = vmatprep.mubr.bf16.mxu0 %v546
        %938 = vmatmul.mubr.bf16.gmra.mrb[0].mxu0 %v545
        %v939 = vpop.f32.mrb[0].mxu0
        %v940 = vadd.f32 0.0, %v939
        %v941 = vpop.f32.mrb[0].mxu0
        %v942 = vadd.f32 0.0, %v941
        %v943 = vpop.f32.mrb[0].mxu0
        %v944 = vadd.f32 0.0, %v943
        %v945 = vpop.f32.mrb[0].mxu0
        %v946 = vadd.f32 0.0, %v945
        %947 = vmatprep.mubr.bf16.mxu0 %v548
        %948 = vmatmul.mubr.bf16.gmra.mrb[0].mxu0 %v547
        %v949 = vpop.f32.mrb[0].mxu0
        %v950 = vadd.f32 0.0, %v949
        %v951 = vpop.f32.mrb[0].mxu0
        %v952 = vadd.f32 0.0, %v951
        %v953 = vpop.f32.mrb[0].mxu0
        %v954 = vadd.f32 0.0, %v953
        %v955 = vpop.f32.mrb[0].mxu0
        %v956 = vadd.f32 0.0, %v955
        %957 = vmatprep.mubr.bf16.mxu0 %v550
        %958 = vmatmul.mubr.bf16.gmra.mrb[0].mxu0 %v549
        %v959 = vpop.f32.mrb[0].mxu0
        %v960 = vadd.f32 0.0, %v959
        %v961 = vpop.f32.mrb[0].mxu0
        %v962 = vadd.f32 0.0, %v961
        %v963 = vpop.f32.mrb[0].mxu0
        %v964 = vadd.f32 0.0, %v963
        %v965 = vpop.f32.mrb[0].mxu0
        %v966 = vadd.f32 0.0, %v965
        %967 = vmatprep.mubr.bf16.mxu0 %v552
        %968 = vmatmul.mubr.bf16.gmra.mrb[0].mxu0 %v551
        %v969 = vpop.f32.mrb[0].mxu0
        %v970 = vadd.f32 0.0, %v969
        %v971 = vpop.f32.mrb[0].mxu0
        %v972 = vadd.f32 0.0, %v971
        %v973 = vpop.f32.mrb[0].mxu0
        %v974 = vadd.f32 0.0, %v973
        %v975 = vpop.f32.mrb[0].mxu0
        %v976 = vadd.f32 0.0, %v975
        %977 = vmatprep.mubr.bf16.mxu0 %v554
        %978 = vmatmul.mubr.bf16.gmra.mrb[0].mxu0 %v553
        %v979 = vpop.f32.mrb[0].mxu0
        %v980 = vadd.f32 0.0, %v979
        %v981 = vpop.f32.mrb[0].mxu0
        %v982 = vadd.f32 0.0, %v981
        %v983 = vpop.f32.mrb[0].mxu0
        %v984 = vadd.f32 0.0, %v983
        %v985 = vpop.f32.mrb[0].mxu0
        %v986 = vadd.f32 0.0, %v985
        %987 = vmatprep.mubr.bf16.mxu0 %v556
        %988 = vmatmul.mubr.bf16.gmra.mrb[0].mxu0 %v555
        %v989 = vpop.f32.mrb[0].mxu0
        %v990 = vadd.f32 0.0, %v989
        %v991 = vpop.f32.mrb[0].mxu0
        %v992 = vadd.f32 0.0, %v991
        %v993 = vpop.f32.mrb[0].mxu0
        %v994 = vadd.f32 0.0, %v993
        %v995 = vpop.f32.mrb[0].mxu0
        %v996 = vadd.f32 0.0, %v995
        %997 = vmatprep.mubr.bf16.mxu0 %v558
        %998 = vmatmul.mubr.bf16.gmra.mrb[0].mxu0 %v557
        %v999 = vpop.f32.mrb[0].mxu0
        %v1000 = vadd.f32 0.0, %v999
        %v1001 = vpop.f32.mrb[0].mxu0
        %v1002 = vadd.f32 0.0, %v1001
        %v1003 = vpop.f32.mrb[0].mxu0
        %v1004 = vadd.f32 0.0, %v1003
        %v1005 = vpop.f32.mrb[0].mxu0
        %v1006 = vadd.f32 0.0, %v1005
        %1007 = vdwg.mxu0
        %1008 = vmatprep.subr.bf16.mxu0 %v770
        %1009 = vmatpush1.bf16.msra.mxu0 %v769
        %1010 = vmatprep.subr.bf16.mxu0 %v774
        %1011 = vmatpush1.bf16.msra.mxu0 %v773
        %1012 = vmatprep.subr.bf16.mxu0 %v778
        %1013 = vmatpush1.bf16.msra.mxu0 %v777
        %1014 = vmatprep.subr.bf16.mxu0 %v782
        %1015 = vmatpush1.bf16.msra.mxu0 %v781
        %1016 = vmatprep.subr.bf16.mxu0 %v786
        %1017 = vmatpush1.bf16.msra.mxu0 %v785
        %1018 = vmatprep.subr.bf16.mxu0 %v790
        %1019 = vmatpush1.bf16.msra.mxu0 %v789
        %1020 = vmatprep.subr.bf16.mxu0 %v794
        %1021 = vmatpush1.bf16.msra.mxu0 %v793
        %1022 = vmatprep.subr.bf16.mxu0 %v798
        %1023 = vmatpush1.bf16.msra.mxu0 %v797
        %1024 = vmatprep.subr.bf16.mxu0 %v802
        %1025 = vmatpush1.bf16.msra.mxu0 %v801
        %1026 = vmatprep.subr.bf16.mxu0 %v806
        %1027 = vmatpush1.bf16.msra.mxu0 %v805
        %1028 = vmatprep.subr.bf16.mxu0 %v810
        %1029 = vmatpush1.bf16.msra.mxu0 %v809
        %1030 = vmatprep.subr.bf16.mxu0 %v814
        %1031 = vmatpush1.bf16.msra.mxu0 %v813
        %1032 = vmatprep.subr.bf16.mxu0 %v818
        %1033 = vmatpush1.bf16.msra.mxu0 %v817
        %1034 = vmatprep.subr.bf16.mxu0 %v822
        %1035 = vmatpush1.bf16.msra.mxu0 %v821
        %1036 = vmatprep.subr.bf16.mxu0 %v826
        %1037 = vmatpush1.bf16.msra.mxu0 %v825
        %1038 = vmatprep.subr.bf16.mxu0 %v830
        %1039 = vmatpush1.bf16.msra.mxu0 %v829
        %1040 = vmatprep.mubr.bf16.mxu0 %v544
        %1041 = vmatmul.mubr.bf16.gmra.mrb[0].mxu0 %v543
        %v1042 = vpop.f32.mrb[0].mxu0
        %v1043 = vadd.f32 0.0, %v1042
        %v1044 = vpop.f32.mrb[0].mxu0
        %v1045 = vadd.f32 0.0, %v1044
        %v1046 = vpop.f32.mrb[0].mxu0
        %v1047 = vadd.f32 0.0, %v1046
        %v1048 = vpop.f32.mrb[0].mxu0
        %v1049 = vadd.f32 0.0, %v1048
        %1050 = vmatprep.mubr.bf16.mxu0 %v546
        %1051 = vmatmul.mubr.bf16.gmra.mrb[0].mxu0 %v545
        %v1052 = vpop.f32.mrb[0].mxu0
        %v1053 = vadd.f32 0.0, %v1052
        %v1054 = vpop.f32.mrb[0].mxu0
        %v1055 = vadd.f32 0.0, %v1054
        %v1056 = vpop.f32.mrb[0].mxu0
        %v1057 = vadd.f32 0.0, %v1056
        %v1058 = vpop.f32.mrb[0].mxu0
        %v1059 = vadd.f32 0.0, %v1058
        %1060 = vmatprep.mubr.bf16.mxu0 %v548
        %1061 = vmatmul.mubr.bf16.gmra.mrb[0].mxu0 %v547
        %v1062 = vpop.f32.mrb[0].mxu0
        %v1063 = vadd.f32 0.0, %v1062
        %v1064 = vpop.f32.mrb[0].mxu0
        %v1065 = vadd.f32 0.0, %v1064
        %v1066 = vpop.f32.mrb[0].mxu0
        %v1067 = vadd.f32 0.0, %v1066
        %v1068 = vpop.f32.mrb[0].mxu0
        %v1069 = vadd.f32 0.0, %v1068
        %1070 = vmatprep.mubr.bf16.mxu0 %v550
        %1071 = vmatmul.mubr.bf16.gmra.mrb[0].mxu0 %v549
        %v1072 = vpop.f32.mrb[0].mxu0
        %v1073 = vadd.f32 0.0, %v1072
        %v1074 = vpop.f32.mrb[0].mxu0
        %v1075 = vadd.f32 0.0, %v1074
        %v1076 = vpop.f32.mrb[0].mxu0
        %v1077 = vadd.f32 0.0, %v1076
        %v1078 = vpop.f32.mrb[0].mxu0
        %v1079 = vadd.f32 0.0, %v1078
        %1080 = vmatprep.mubr.bf16.mxu0 %v552
        %1081 = vmatmul.mubr.bf16.gmra.mrb[0].mxu0 %v551
        %v1082 = vpop.f32.mrb[0].mxu0
        %v1083 = vadd.f32 0.0, %v1082
        %v1084 = vpop.f32.mrb[0].mxu0
        %v1085 = vadd.f32 0.0, %v1084
        %v1086 = vpop.f32.mrb[0].mxu0
        %v1087 = vadd.f32 0.0, %v1086
        %v1088 = vpop.f32.mrb[0].mxu0
        %v1089 = vadd.f32 0.0, %v1088
        %1090 = vmatprep.mubr.bf16.mxu0 %v554
        %1091 = vmatmul.mubr.bf16.gmra.mrb[0].mxu0 %v553
        %v1092 = vpop.f32.mrb[0].mxu0
        %v1093 = vadd.f32 0.0, %v1092
        %v1094 = vpop.f32.mrb[0].mxu0
        %v1095 = vadd.f32 0.0, %v1094
        %v1096 = vpop.f32.mrb[0].mxu0
        %v1097 = vadd.f32 0.0, %v1096
        %v1098 = vpop.f32.mrb[0].mxu0
        %v1099 = vadd.f32 0.0, %v1098
        %1100 = vmatprep.mubr.bf16.mxu0 %v556
        %1101 = vmatmul.mubr.bf16.gmra.mrb[0].mxu0 %v555
        %v1102 = vpop.f32.mrb[0].mxu0
        %v1103 = vadd.f32 0.0, %v1102
        %v1104 = vpop.f32.mrb[0].mxu0
        %v1105 = vadd.f32 0.0, %v1104
        %v1106 = vpop.f32.mrb[0].mxu0
        %v1107 = vadd.f32 0.0, %v1106
        %v1108 = vpop.f32.mrb[0].mxu0
        %v1109 = vadd.f32 0.0, %v1108
        %1110 = vmatprep.mubr.bf16.mxu0 %v558
        %1111 = vmatmul.mubr.bf16.gmra.mrb[0].mxu0 %v557
        %v1112 = vpop.f32.mrb[0].mxu0
        %v1113 = vadd.f32 0.0, %v1112
        %v1114 = vpop.f32.mrb[0].mxu0
        %v1115 = vadd.f32 0.0, %v1114
        %v1116 = vpop.f32.mrb[0].mxu0
        %v1117 = vadd.f32 0.0, %v1116
        %v1118 = vpop.f32.mrb[0].mxu0
        %v1119 = vadd.f32 0.0, %v1118
        %1120 = vdwg.mxu0
        %v1121 = vxor.u32 %v930, 2147483648
        %v1122 = vxor.u32 %v932, 2147483648
        %v1123 = vxor.u32 %v934, 2147483648
        %v1124 = vxor.u32 %v936, 2147483648
        %v1125 = vxor.u32 %v940, 2147483648
        %v1126 = vxor.u32 %v942, 2147483648
        %v1127 = vxor.u32 %v944, 2147483648
        %v1128 = vxor.u32 %v946, 2147483648
        %v1129 = vxor.u32 %v950, 2147483648
        %v1130 = vxor.u32 %v952, 2147483648
        %v1131 = vxor.u32 %v954, 2147483648
        %v1132 = vxor.u32 %v956, 2147483648
        %v1133 = vxor.u32 %v960, 2147483648
        %v1134 = vxor.u32 %v962, 2147483648
        %v1135 = vxor.u32 %v964, 2147483648
        %v1136 = vxor.u32 %v966, 2147483648
        %v1137 = vxor.u32 %v970, 2147483648
        %v1138 = vxor.u32 %v972, 2147483648
        %v1139 = vxor.u32 %v974, 2147483648
        %v1140 = vxor.u32 %v976, 2147483648
        %v1141 = vxor.u32 %v980, 2147483648
        %v1142 = vxor.u32 %v982, 2147483648
        %v1143 = vxor.u32 %v984, 2147483648
        %v1144 = vxor.u32 %v986, 2147483648
        %v1145 = vxor.u32 %v990, 2147483648
        %v1146 = vxor.u32 %v992, 2147483648
        %v1147 = vxor.u32 %v994, 2147483648
        %v1148 = vxor.u32 %v996, 2147483648
        %v1149 = vxor.u32 %v1000, 2147483648
        %v1150 = vxor.u32 %v1002, 2147483648
        %v1151 = vxor.u32 %v1004, 2147483648
        %v1152 = vxor.u32 %v1006, 2147483648
        %v1153 = vmul.f32 %v1121, 1.442695
        %v1154 = vpow.pop %v1153
        %v1155 = vmul.f32 %v1122, 1.442695
        %v1156 = vpow.pop %v1155
        %v1157 = vmul.f32 %v1123, 1.442695
        %v1158 = vpow.pop %v1157
        %v1159 = vmul.f32 %v1124, 1.442695
        %v1160 = vpow.pop %v1159
        %v1161 = vmul.f32 %v1125, 1.442695
        %v1162 = vpow.pop %v1161
        %v1163 = vmul.f32 %v1126, 1.442695
        %v1164 = vpow.pop %v1163
        %v1165 = vmul.f32 %v1127, 1.442695
        %v1166 = vpow.pop %v1165
        %v1167 = vmul.f32 %v1128, 1.442695
        %v1168 = vpow.pop %v1167
        %v1169 = vmul.f32 %v1129, 1.442695
        %v1170 = vpow.pop %v1169
        %v1171 = vmul.f32 %v1130, 1.442695
        %v1172 = vpow.pop %v1171
        %v1173 = vmul.f32 %v1131, 1.442695
        %v1174 = vpow.pop %v1173
        %v1175 = vmul.f32 %v1132, 1.442695
        %v1176 = vpow.pop %v1175
        %v1177 = vmul.f32 %v1133, 1.442695
        %v1178 = vpow.pop %v1177
        %v1179 = vmul.f32 %v1134, 1.442695
        %v1180 = vpow.pop %v1179
        %v1181 = vmul.f32 %v1135, 1.442695
        %v1182 = vpow.pop %v1181
        %v1183 = vmul.f32 %v1136, 1.442695
        %v1184 = vpow.pop %v1183
        %v1185 = vmul.f32 %v1137, 1.442695
        %v1186 = vpow.pop %v1185
        %v1187 = vmul.f32 %v1138, 1.442695
        %v1188 = vpow.pop %v1187
        %v1189 = vmul.f32 %v1139, 1.442695
        %v1190 = vpow.pop %v1189
        %v1191 = vmul.f32 %v1140, 1.442695
        %v1192 = vpow.pop %v1191
        %v1193 = vmul.f32 %v1141, 1.442695
        %v1194 = vpow.pop %v1193
        %v1195 = vmul.f32 %v1142, 1.442695
        %v1196 = vpow.pop %v1195
        %v1197 = vmul.f32 %v1143, 1.442695
        %v1198 = vpow.pop %v1197
        %v1199 = vmul.f32 %v1144, 1.442695
        %v1200 = vpow.pop %v1199
        %v1201 = vmul.f32 %v1145, 1.442695
        %v1202 = vpow.pop %v1201
        %v1203 = vmul.f32 %v1146, 1.442695
        %v1204 = vpow.pop %v1203
        %v1205 = vmul.f32 %v1147, 1.442695
        %v1206 = vpow.pop %v1205
        %v1207 = vmul.f32 %v1148, 1.442695
        %v1208 = vpow.pop %v1207
        %v1209 = vmul.f32 %v1149, 1.442695
        %v1210 = vpow.pop %v1209
        %v1211 = vmul.f32 %v1150, 1.442695
        %v1212 = vpow.pop %v1211
        %v1213 = vmul.f32 %v1151, 1.442695
        %v1214 = vpow.pop %v1213
        %v1215 = vmul.f32 %v1152, 1.442695
        %v1216 = vpow.pop %v1215
        %v1217 = vadd.f32 %v1154, 1.0
        %v1218 = vadd.f32 %v1156, 1.0
        %v1219 = vadd.f32 %v1158, 1.0
        %v1220 = vadd.f32 %v1160, 1.0
        %v1221 = vadd.f32 %v1162, 1.0
        %v1222 = vadd.f32 %v1164, 1.0
        %v1223 = vadd.f32 %v1166, 1.0
        %v1224 = vadd.f32 %v1168, 1.0
        %v1225 = vadd.f32 %v1170, 1.0
        %v1226 = vadd.f32 %v1172, 1.0
        %v1227 = vadd.f32 %v1174, 1.0
        %v1228 = vadd.f32 %v1176, 1.0
        %v1229 = vadd.f32 %v1178, 1.0
        %v1230 = vadd.f32 %v1180, 1.0
        %v1231 = vadd.f32 %v1182, 1.0
        %v1232 = vadd.f32 %v1184, 1.0
        %v1233 = vadd.f32 %v1186, 1.0
        %v1234 = vadd.f32 %v1188, 1.0
        %v1235 = vadd.f32 %v1190, 1.0
        %v1236 = vadd.f32 %v1192, 1.0
        %v1237 = vadd.f32 %v1194, 1.0
        %v1238 = vadd.f32 %v1196, 1.0
        %v1239 = vadd.f32 %v1198, 1.0
        %v1240 = vadd.f32 %v1200, 1.0
        %v1241 = vadd.f32 %v1202, 1.0
        %v1242 = vadd.f32 %v1204, 1.0
        %v1243 = vadd.f32 %v1206, 1.0
        %v1244 = vadd.f32 %v1208, 1.0
        %v1245 = vadd.f32 %v1210, 1.0
        %v1246 = vadd.f32 %v1212, 1.0
        %v1247 = vadd.f32 %v1214, 1.0
        %v1248 = vadd.f32 %v1216, 1.0
        %v1249 = vrcp.pop %v1217
        %v1250 = vmul.f32 1.0, %v1249
        %v1251 = vrcp.pop %v1218
        %v1252 = vmul.f32 1.0, %v1251
        %v1253 = vrcp.pop %v1219
        %v1254 = vmul.f32 1.0, %v1253
        %v1255 = vrcp.pop %v1220
        %v1256 = vmul.f32 1.0, %v1255
        %v1257 = vrcp.pop %v1221
        %v1258 = vmul.f32 1.0, %v1257
        %v1259 = vrcp.pop %v1222
        %v1260 = vmul.f32 1.0, %v1259
        %v1261 = vrcp.pop %v1223
        %v1262 = vmul.f32 1.0, %v1261
        %v1263 = vrcp.pop %v1224
        %v1264 = vmul.f32 1.0, %v1263
        %v1265 = vrcp.pop %v1225
        %v1266 = vmul.f32 1.0, %v1265
        %v1267 = vrcp.pop %v1226
        %v1268 = vmul.f32 1.0, %v1267
        %v1269 = vrcp.pop %v1227
        %v1270 = vmul.f32 1.0, %v1269
        %v1271 = vrcp.pop %v1228
        %v1272 = vmul.f32 1.0, %v1271
        %v1273 = vrcp.pop %v1229
        %v1274 = vmul.f32 1.0, %v1273
        %v1275 = vrcp.pop %v1230
        %v1276 = vmul.f32 1.0, %v1275
        %v1277 = vrcp.pop %v1231
        %v1278 = vmul.f32 1.0, %v1277
        %v1279 = vrcp.pop %v1232
        %v1280 = vmul.f32 1.0, %v1279
        %v1281 = vrcp.pop %v1233
        %v1282 = vmul.f32 1.0, %v1281
        %v1283 = vrcp.pop %v1234
        %v1284 = vmul.f32 1.0, %v1283
        %v1285 = vrcp.pop %v1235
        %v1286 = vmul.f32 1.0, %v1285
        %v1287 = vrcp.pop %v1236
        %v1288 = vmul.f32 1.0, %v1287
        %v1289 = vrcp.pop %v1237
        %v1290 = vmul.f32 1.0, %v1289
        %v1291 = vrcp.pop %v1238
        %v1292 = vmul.f32 1.0, %v1291
        %v1293 = vrcp.pop %v1239
        %v1294 = vmul.f32 1.0, %v1293
        %v1295 = vrcp.pop %v1240
        %v1296 = vmul.f32 1.0, %v1295
        %v1297 = vrcp.pop %v1241
        %v1298 = vmul.f32 1.0, %v1297
        %v1299 = vrcp.pop %v1242
        %v1300 = vmul.f32 1.0, %v1299
        %v1301 = vrcp.pop %v1243
        %v1302 = vmul.f32 1.0, %v1301
        %v1303 = vrcp.pop %v1244
        %v1304 = vmul.f32 1.0, %v1303
        %v1305 = vrcp.pop %v1245
        %v1306 = vmul.f32 1.0, %v1305
        %v1307 = vrcp.pop %v1246
        %v1308 = vmul.f32 1.0, %v1307
        %v1309 = vrcp.pop %v1247
        %v1310 = vmul.f32 1.0, %v1309
        %v1311 = vrcp.pop %v1248
        %v1312 = vmul.f32 1.0, %v1311
        %v1313 = vmul.f32 %v930, %v1250
        %v1314 = vmul.f32 %v932, %v1252
        %v1315 = vmul.f32 %v934, %v1254
        %v1316 = vmul.f32 %v936, %v1256
        %v1317 = vmul.f32 %v940, %v1258
        %v1318 = vmul.f32 %v942, %v1260
        %v1319 = vmul.f32 %v944, %v1262
        %v1320 = vmul.f32 %v946, %v1264
        %v1321 = vmul.f32 %v950, %v1266
        %v1322 = vmul.f32 %v952, %v1268
        %v1323 = vmul.f32 %v954, %v1270
        %v1324 = vmul.f32 %v956, %v1272
        %v1325 = vmul.f32 %v960, %v1274
        %v1326 = vmul.f32 %v962, %v1276
        %v1327 = vmul.f32 %v964, %v1278
        %v1328 = vmul.f32 %v966, %v1280
        %v1329 = vmul.f32 %v970, %v1282
        %v1330 = vmul.f32 %v972, %v1284
        %v1331 = vmul.f32 %v974, %v1286
        %v1332 = vmul.f32 %v976, %v1288
        %v1333 = vmul.f32 %v980, %v1290
        %v1334 = vmul.f32 %v982, %v1292
        %v1335 = vmul.f32 %v984, %v1294
        %v1336 = vmul.f32 %v986, %v1296
        %v1337 = vmul.f32 %v990, %v1298
        %v1338 = vmul.f32 %v992, %v1300
        %v1339 = vmul.f32 %v994, %v1302
        %v1340 = vmul.f32 %v996, %v1304
        %v1341 = vmul.f32 %v1000, %v1306
        %v1342 = vmul.f32 %v1002, %v1308
        %v1343 = vmul.f32 %v1004, %v1310
        %v1344 = vmul.f32 %v1006, %v1312
        %v1345 = vmul.f32 %v1313, %v1043
        %v1346 = vmul.f32 %v1314, %v1045
        %v1347 = vmul.f32 %v1315, %v1047
        %v1348 = vmul.f32 %v1316, %v1049
        %v1349 = vmul.f32 %v1317, %v1053
        %v1350 = vmul.f32 %v1318, %v1055
        %v1351 = vmul.f32 %v1319, %v1057
        %v1352 = vmul.f32 %v1320, %v1059
        %v1353 = vmul.f32 %v1321, %v1063
        %v1354 = vmul.f32 %v1322, %v1065
        %v1355 = vmul.f32 %v1323, %v1067
        %v1356 = vmul.f32 %v1324, %v1069
        %v1357 = vmul.f32 %v1325, %v1073
        %v1358 = vmul.f32 %v1326, %v1075
        %v1359 = vmul.f32 %v1327, %v1077
        %v1360 = vmul.f32 %v1328, %v1079
        %v1361 = vmul.f32 %v1329, %v1083
        %v1362 = vmul.f32 %v1330, %v1085
        %v1363 = vmul.f32 %v1331, %v1087
        %v1364 = vmul.f32 %v1332, %v1089
        %v1365 = vmul.f32 %v1333, %v1093
        %v1366 = vmul.f32 %v1334, %v1095
        %v1367 = vmul.f32 %v1335, %v1097
        %v1368 = vmul.f32 %v1336, %v1099
        %v1369 = vmul.f32 %v1337, %v1103
        %v1370 = vmul.f32 %v1338, %v1105
        %v1371 = vmul.f32 %v1339, %v1107
        %v1372 = vmul.f32 %v1340, %v1109
        %v1373 = vmul.f32 %v1341, %v1113
        %v1374 = vmul.f32 %v1342, %v1115
        %v1375 = vmul.f32 %v1343, %v1117
        %v1376 = vmul.f32 %v1344, %v1119
        %v1377 = vpack.c.bf16 %v1347, %v1345
        %v1378 = vpack.c.bf16 %v1348, %v1346
        %v1379 = vpack.c.bf16 %v1351, %v1349
        %v1380 = vpack.c.bf16 %v1352, %v1350
        %v1381 = vpack.c.bf16 %v1355, %v1353
        %v1382 = vpack.c.bf16 %v1356, %v1354
        %v1383 = vpack.c.bf16 %v1359, %v1357
        %v1384 = vpack.c.bf16 %v1360, %v1358
        %v1385 = vpack.c.bf16 %v1363, %v1361
        %v1386 = vpack.c.bf16 %v1364, %v1362
        %v1387 = vpack.c.bf16 %v1367, %v1365
        %v1388 = vpack.c.bf16 %v1368, %v1366
        %v1389 = vpack.c.bf16 %v1371, %v1369
        %v1390 = vpack.c.bf16 %v1372, %v1370
        %v1391 = vpack.c.bf16 %v1375, %v1373
        %v1392 = vpack.c.bf16 %v1376, %v1374
        %v1393 = vld [vmem:[#allocation2] sm:$0xff]
        %v1394 = vld [vmem:[#allocation2 + $0x8] sm:$0xff]
        %v1395 = vld [vmem:[#allocation2 + $0x10] sm:$0xff]
        %v1396 = vld [vmem:[#allocation2 + $0x18] sm:$0xff]
        %v1397 = vld [vmem:[#allocation2 + $0x20] sm:$0xff]
        %v1398 = vld [vmem:[#allocation2 + $0x28] sm:$0xff]
        %v1399 = vld [vmem:[#allocation2 + $0x30] sm:$0xff]
        %v1400 = vld [vmem:[#allocation2 + $0x38] sm:$0xff]
        %v1401 = vld [vmem:[#allocation2 + $0x40] sm:$0xff]
        %v1402 = vld [vmem:[#allocation2 + $0x48] sm:$0xff]
        %v1403 = vld [vmem:[#allocation2 + $0x50] sm:$0xff]
        %v1404 = vld [vmem:[#allocation2 + $0x58] sm:$0xff]
        %v1405 = vld [vmem:[#allocation2 + $0x60] sm:$0xff]
        %v1406 = vld [vmem:[#allocation2 + $0x68] sm:$0xff]
        %v1407 = vld [vmem:[#allocation2 + $0x70] sm:$0xff]
        %v1408 = vld [vmem:[#allocation2 + $0x78] sm:$0xff]
        %v1409 = vld [vmem:[#allocation2 + $0x80] sm:$0xff]
        %v1410 = vld [vmem:[#allocation2 + $0x88] sm:$0xff]
        %v1411 = vld [vmem:[#allocation2 + $0x90] sm:$0xff]
        %v1412 = vld [vmem:[#allocation2 + $0x98] sm:$0xff]
        %v1413 = vld [vmem:[#allocation2 + $0xa0] sm:$0xff]
        %v1414 = vld [vmem:[#allocation2 + $0xa8] sm:$0xff]
        %v1415 = vld [vmem:[#allocation2 + $0xb0] sm:$0xff]
        %v1416 = vld [vmem:[#allocation2 + $0xb8] sm:$0xff]
        %v1417 = vld [vmem:[#allocation2 + $0xc0] sm:$0xff]
        %v1418 = vld [vmem:[#allocation2 + $0xc8] sm:$0xff]
        %v1419 = vld [vmem:[#allocation2 + $0xd0] sm:$0xff]
        %v1420 = vld [vmem:[#allocation2 + $0xd8] sm:$0xff]
        %v1421 = vld [vmem:[#allocation2 + $0xe0] sm:$0xff]
        %v1422 = vld [vmem:[#allocation2 + $0xe8] sm:$0xff]
        %v1423 = vld [vmem:[#allocation2 + $0xf0] sm:$0xff]
        %v1424 = vld [vmem:[#allocation2 + $0xf8] sm:$0xff]
        %v1425 = vld [vmem:[%s376] sm:$0xff]
        %v1426 = vld [vmem:[%s376 + $0x8] sm:$0xff]
        %v1427 = vld [vmem:[%s376 + $0x10] sm:$0xff]
        %v1428 = vld [vmem:[%s376 + $0x18] sm:$0xff]
        %v1429 = vld [vmem:[%s376 + $0x20] sm:$0xff]
        %v1430 = vld [vmem:[%s376 + $0x28] sm:$0xff]
        %v1431 = vld [vmem:[%s376 + $0x30] sm:$0xff]
        %v1432 = vld [vmem:[%s376 + $0x38] sm:$0xff]
        %v1433 = vld [vmem:[%s376 + $0x40] sm:$0xff]
        %v1434 = vld [vmem:[%s376 + $0x48] sm:$0xff]
        %v1435 = vld [vmem:[%s376 + $0x50] sm:$0xff]
        %v1436 = vld [vmem:[%s376 + $0x58] sm:$0xff]
        %v1437 = vld [vmem:[%s376 + $0x60] sm:$0xff]
        %v1438 = vld [vmem:[%s376 + $0x68] sm:$0xff]
        %v1439 = vld [vmem:[%s376 + $0x70] sm:$0xff]
        %v1440 = vld [vmem:[%s376 + $0x78] sm:$0xff]
        %v1441 = vld [vmem:[%s376 + $0x80] sm:$0xff]
        %v1442 = vld [vmem:[%s376 + $0x88] sm:$0xff]
        %v1443 = vld [vmem:[%s376 + $0x90] sm:$0xff]
        %v1444 = vld [vmem:[%s376 + $0x98] sm:$0xff]
        %v1445 = vld [vmem:[%s376 + $0xa0] sm:$0xff]
        %v1446 = vld [vmem:[%s376 + $0xa8] sm:$0xff]
        %v1447 = vld [vmem:[%s376 + $0xb0] sm:$0xff]
        %v1448 = vld [vmem:[%s376 + $0xb8] sm:$0xff]
        %v1449 = vld [vmem:[%s376 + $0xc0] sm:$0xff]
        %v1450 = vld [vmem:[%s376 + $0xc8] sm:$0xff]
        %v1451 = vld [vmem:[%s376 + $0xd0] sm:$0xff]
        %v1452 = vld [vmem:[%s376 + $0xd8] sm:$0xff]
        %v1453 = vld [vmem:[%s376 + $0xe0] sm:$0xff]
        %v1454 = vld [vmem:[%s376 + $0xe8] sm:$0xff]
        %v1455 = vld [vmem:[%s376 + $0xf0] sm:$0xff]
        %v1456 = vld [vmem:[%s376 + $0xf8] sm:$0xff]
        %v1489 = vunpack.c.l.b16 %v1425
        %v1490 = vunpack.c.h.b16 %v1425
        %v1491 = vunpack.c.l.b16 %v1426
        %v1492 = vunpack.c.h.b16 %v1426
        %v1493 = vunpack.c.l.b16 %v1427
        %v1494 = vunpack.c.h.b16 %v1427
        %v1495 = vunpack.c.l.b16 %v1428
        %v1496 = vunpack.c.h.b16 %v1428
        %v1497 = vunpack.c.l.b16 %v1429
        %v1498 = vunpack.c.h.b16 %v1429
        %v1499 = vunpack.c.l.b16 %v1430
        %v1500 = vunpack.c.h.b16 %v1430
        %v1501 = vunpack.c.l.b16 %v1431
        %v1502 = vunpack.c.h.b16 %v1431
        %v1503 = vunpack.c.l.b16 %v1432
        %v1504 = vunpack.c.h.b16 %v1432
        %v1505 = vunpack.c.l.b16 %v1433
        %v1506 = vunpack.c.h.b16 %v1433
        %v1507 = vunpack.c.l.b16 %v1434
        %v1508 = vunpack.c.h.b16 %v1434
        %v1509 = vunpack.c.l.b16 %v1435
        %v1510 = vunpack.c.h.b16 %v1435
        %v1511 = vunpack.c.l.b16 %v1436
        %v1512 = vunpack.c.h.b16 %v1436
        %v1513 = vunpack.c.l.b16 %v1437
        %v1514 = vunpack.c.h.b16 %v1437
        %v1515 = vunpack.c.l.b16 %v1438
        %v1516 = vunpack.c.h.b16 %v1438
        %v1517 = vunpack.c.l.b16 %v1439
        %v1518 = vunpack.c.h.b16 %v1439
        %v1519 = vunpack.c.l.b16 %v1440
        %v1520 = vunpack.c.h.b16 %v1440
        %v1521 = vunpack.c.l.b16 %v1441
        %v1522 = vunpack.c.h.b16 %v1441
        %v1523 = vunpack.c.l.b16 %v1442
        %v1524 = vunpack.c.h.b16 %v1442
        %v1525 = vunpack.c.l.b16 %v1443
        %v1526 = vunpack.c.h.b16 %v1443
        %v1527 = vunpack.c.l.b16 %v1444
        %v1528 = vunpack.c.h.b16 %v1444
        %v1529 = vunpack.c.l.b16 %v1445
        %v1530 = vunpack.c.h.b16 %v1445
        %v1531 = vunpack.c.l.b16 %v1446
        %v1532 = vunpack.c.h.b16 %v1446
        %v1533 = vunpack.c.l.b16 %v1447
        %v1534 = vunpack.c.h.b16 %v1447
        %v1535 = vunpack.c.l.b16 %v1448
        %v1536 = vunpack.c.h.b16 %v1448
        %v1537 = vunpack.c.l.b16 %v1449
        %v1538 = vunpack.c.h.b16 %v1449
        %v1539 = vunpack.c.l.b16 %v1450
        %v1540 = vunpack.c.h.b16 %v1450
        %v1541 = vunpack.c.l.b16 %v1451
        %v1542 = vunpack.c.h.b16 %v1451
        %v1543 = vunpack.c.l.b16 %v1452
        %v1544 = vunpack.c.h.b16 %v1452
        %v1545 = vunpack.c.l.b16 %v1453
        %v1546 = vunpack.c.h.b16 %v1453
        %v1547 = vunpack.c.l.b16 %v1454
        %v1548 = vunpack.c.h.b16 %v1454
        %v1549 = vunpack.c.l.b16 %v1455
        %v1550 = vunpack.c.h.b16 %v1455
        %v1551 = vunpack.c.l.b16 %v1456
        %v1552 = vunpack.c.h.b16 %v1456
        %v1553 = vpack.c.b16 %v1491, %v1489
        %v1554 = vpack.c.b16 %v1492, %v1490
        %v1555 = vpack.c.b16 %v1495, %v1493
        %v1556 = vpack.c.b16 %v1496, %v1494
        %v1557 = vpack.c.b16 %v1499, %v1497
        %v1558 = vpack.c.b16 %v1500, %v1498
        %v1559 = vpack.c.b16 %v1503, %v1501
        %v1560 = vpack.c.b16 %v1504, %v1502
        %v1561 = vpack.c.b16 %v1507, %v1505
        %v1562 = vpack.c.b16 %v1508, %v1506
        %v1563 = vpack.c.b16 %v1511, %v1509
        %v1564 = vpack.c.b16 %v1512, %v1510
        %v1565 = vpack.c.b16 %v1515, %v1513
        %v1566 = vpack.c.b16 %v1516, %v1514
        %v1567 = vpack.c.b16 %v1519, %v1517
        %v1568 = vpack.c.b16 %v1520, %v1518
        %v1569 = vpack.c.b16 %v1523, %v1521
        %v1570 = vpack.c.b16 %v1524, %v1522
        %v1571 = vpack.c.b16 %v1527, %v1525
        %v1572 = vpack.c.b16 %v1528, %v1526
        %v1573 = vpack.c.b16 %v1531, %v1529
        %v1574 = vpack.c.b16 %v1532, %v1530
        %v1575 = vpack.c.b16 %v1535, %v1533
        %v1576 = vpack.c.b16 %v1536, %v1534
        %v1577 = vpack.c.b16 %v1539, %v1537
        %v1578 = vpack.c.b16 %v1540, %v1538
        %v1579 = vpack.c.b16 %v1543, %v1541
        %v1580 = vpack.c.b16 %v1544, %v1542
        %v1581 = vpack.c.b16 %v1547, %v1545
        %v1582 = vpack.c.b16 %v1548, %v1546
        %v1583 = vpack.c.b16 %v1551, %v1549
        %v1584 = vpack.c.b16 %v1552, %v1550
        %1617 = vmatprep.subr.bf16.mxu0 %v1554
        %1618 = vmatpush1.bf16.msra.mxu0 %v1553
        %1619 = vmatprep.subr.bf16.mxu0 %v1556
        %1620 = vmatpush1.bf16.msra.mxu0 %v1555
        %1621 = vmatprep.subr.bf16.mxu0 %v1558
        %1622 = vmatpush1.bf16.msra.mxu0 %v1557
        %1623 = vmatprep.subr.bf16.mxu0 %v1560
        %1624 = vmatpush1.bf16.msra.mxu0 %v1559
        %1625 = vmatprep.subr.bf16.mxu0 %v1562
        %1626 = vmatpush1.bf16.msra.mxu0 %v1561
        %1627 = vmatprep.subr.bf16.mxu0 %v1564
        %1628 = vmatpush1.bf16.msra.mxu0 %v1563
        %1629 = vmatprep.subr.bf16.mxu0 %v1566
        %1630 = vmatpush1.bf16.msra.mxu0 %v1565
        %1631 = vmatprep.subr.bf16.mxu0 %v1568
        %1632 = vmatpush1.bf16.msra.mxu0 %v1567
        %1633 = vmatprep.subr.bf16.mxu0 %v1570
        %1634 = vmatpush1.bf16.msra.mxu0 %v1569
        %1635 = vmatprep.subr.bf16.mxu0 %v1572
        %1636 = vmatpush1.bf16.msra.mxu0 %v1571
        %1637 = vmatprep.subr.bf16.mxu0 %v1574
        %1638 = vmatpush1.bf16.msra.mxu0 %v1573
        %1639 = vmatprep.subr.bf16.mxu0 %v1576
        %1640 = vmatpush1.bf16.msra.mxu0 %v1575
        %1641 = vmatprep.subr.bf16.mxu0 %v1578
        %1642 = vmatpush1.bf16.msra.mxu0 %v1577
        %1643 = vmatprep.subr.bf16.mxu0 %v1580
        %1644 = vmatpush1.bf16.msra.mxu0 %v1579
        %1645 = vmatprep.subr.bf16.mxu0 %v1582
        %1646 = vmatpush1.bf16.msra.mxu0 %v1581
        %1647 = vmatprep.subr.bf16.mxu0 %v1584
        %1648 = vmatpush1.bf16.msra.mxu0 %v1583
        %1649 = vmatprep.mubr.bf16.mxu0 %v1378
        %1650 = vmatmul.mubr.bf16.gmra.mrb[0].mxu0 %v1377
        %v1651 = vpop.f32.mrb[0].mxu0
        %v1652 = vadd.f32 0.0, %v1651
        %v1653 = vpop.f32.mrb[0].mxu0
        %v1654 = vadd.f32 0.0, %v1653
        %v1655 = vpop.f32.mrb[0].mxu0
        %v1656 = vadd.f32 0.0, %v1655
        %v1657 = vpop.f32.mrb[0].mxu0
        %v1658 = vadd.f32 0.0, %v1657
        %1659 = vmatprep.mubr.bf16.mxu0 %v1380
        %1660 = vmatmul.mubr.bf16.gmra.mrb[0].mxu0 %v1379
        %v1661 = vpop.f32.mrb[0].mxu0
        %v1662 = vadd.f32 0.0, %v1661
        %v1663 = vpop.f32.mrb[0].mxu0
        %v1664 = vadd.f32 0.0, %v1663
        %v1665 = vpop.f32.mrb[0].mxu0
        %v1666 = vadd.f32 0.0, %v1665
        %v1667 = vpop.f32.mrb[0].mxu0
        %v1668 = vadd.f32 0.0, %v1667
        %1669 = vmatprep.mubr.bf16.mxu0 %v1382
        %1670 = vmatmul.mubr.bf16.gmra.mrb[0].mxu0 %v1381
        %v1671 = vpop.f32.mrb[0].mxu0
        %v1672 = vadd.f32 0.0, %v1671
        %v1673 = vpop.f32.mrb[0].mxu0
        %v1674 = vadd.f32 0.0, %v1673
        %v1675 = vpop.f32.mrb[0].mxu0
        %v1676 = vadd.f32 0.0, %v1675
        %v1677 = vpop.f32.mrb[0].mxu0
        %v1678 = vadd.f32 0.0, %v1677
        %1679 = vmatprep.mubr.bf16.mxu0 %v1384
        %1680 = vmatmul.mubr.bf16.gmra.mrb[0].mxu0 %v1383
        %v1681 = vpop.f32.mrb[0].mxu0
        %v1682 = vadd.f32 0.0, %v1681
        %v1683 = vpop.f32.mrb[0].mxu0
        %v1684 = vadd.f32 0.0, %v1683
        %v1685 = vpop.f32.mrb[0].mxu0
        %v1686 = vadd.f32 0.0, %v1685
        %v1687 = vpop.f32.mrb[0].mxu0
        %v1688 = vadd.f32 0.0, %v1687
        %1689 = vmatprep.mubr.bf16.mxu0 %v1386
        %1690 = vmatmul.mubr.bf16.gmra.mrb[0].mxu0 %v1385
        %v1691 = vpop.f32.mrb[0].mxu0
        %v1692 = vadd.f32 0.0, %v1691
        %v1693 = vpop.f32.mrb[0].mxu0
        %v1694 = vadd.f32 0.0, %v1693
        %v1695 = vpop.f32.mrb[0].mxu0
        %v1696 = vadd.f32 0.0, %v1695
        %v1697 = vpop.f32.mrb[0].mxu0
        %v1698 = vadd.f32 0.0, %v1697
        %1699 = vmatprep.mubr.bf16.mxu0 %v1388
        %1700 = vmatmul.mubr.bf16.gmra.mrb[0].mxu0 %v1387
        %v1701 = vpop.f32.mrb[0].mxu0
        %v1702 = vadd.f32 0.0, %v1701
        %v1703 = vpop.f32.mrb[0].mxu0
        %v1704 = vadd.f32 0.0, %v1703
        %v1705 = vpop.f32.mrb[0].mxu0
        %v1706 = vadd.f32 0.0, %v1705
        %v1707 = vpop.f32.mrb[0].mxu0
        %v1708 = vadd.f32 0.0, %v1707
        %1709 = vmatprep.mubr.bf16.mxu0 %v1390
        %1710 = vmatmul.mubr.bf16.gmra.mrb[0].mxu0 %v1389
        %v1711 = vpop.f32.mrb[0].mxu0
        %v1712 = vadd.f32 0.0, %v1711
        %v1713 = vpop.f32.mrb[0].mxu0
        %v1714 = vadd.f32 0.0, %v1713
        %v1715 = vpop.f32.mrb[0].mxu0
        %v1716 = vadd.f32 0.0, %v1715
        %v1717 = vpop.f32.mrb[0].mxu0
        %v1718 = vadd.f32 0.0, %v1717
        %1719 = vmatprep.mubr.bf16.mxu0 %v1392
        %1720 = vmatmul.mubr.bf16.gmra.mrb[0].mxu0 %v1391
        %v1721 = vpop.f32.mrb[0].mxu0
        %v1722 = vadd.f32 0.0, %v1721
        %v1723 = vpop.f32.mrb[0].mxu0
        %v1724 = vadd.f32 0.0, %v1723
        %v1725 = vpop.f32.mrb[0].mxu0
        %v1726 = vadd.f32 0.0, %v1725
        %v1727 = vpop.f32.mrb[0].mxu0
        %v1728 = vadd.f32 0.0, %v1727
        %1729 = vdwg.mxu0
        %v1730 = vadd.f32 %v1393, %v1652
        %v1731 = vadd.f32 %v1394, %v1654
        %v1732 = vadd.f32 %v1395, %v1656
        %v1733 = vadd.f32 %v1396, %v1658
        %v1734 = vadd.f32 %v1397, %v1662
        %v1735 = vadd.f32 %v1398, %v1664
        %v1736 = vadd.f32 %v1399, %v1666
        %v1737 = vadd.f32 %v1400, %v1668
        %v1738 = vadd.f32 %v1401, %v1672
        %v1739 = vadd.f32 %v1402, %v1674
        %v1740 = vadd.f32 %v1403, %v1676
        %v1741 = vadd.f32 %v1404, %v1678
        %v1742 = vadd.f32 %v1405, %v1682
        %v1743 = vadd.f32 %v1406, %v1684
        %v1744 = vadd.f32 %v1407, %v1686
        %v1745 = vadd.f32 %v1408, %v1688
        %v1746 = vadd.f32 %v1409, %v1692
        %v1747 = vadd.f32 %v1410, %v1694
        %v1748 = vadd.f32 %v1411, %v1696
        %v1749 = vadd.f32 %v1412, %v1698
        %v1750 = vadd.f32 %v1413, %v1702
        %v1751 = vadd.f32 %v1414, %v1704
        %v1752 = vadd.f32 %v1415, %v1706
        %v1753 = vadd.f32 %v1416, %v1708
        %v1754 = vadd.f32 %v1417, %v1712
        %v1755 = vadd.f32 %v1418, %v1714
        %v1756 = vadd.f32 %v1419, %v1716
        %v1757 = vadd.f32 %v1420, %v1718
        %v1758 = vadd.f32 %v1421, %v1722
        %v1759 = vadd.f32 %v1422, %v1724
        %v1760 = vadd.f32 %v1423, %v1726
        %v1761 = vadd.f32 %v1424, %v1728
        %1762 = vst [vmem:[#allocation2] sm:$0xff] %v1730
        %1763 = vst [vmem:[#allocation2 + $0x8] sm:$0xff] %v1731
        %1764 = vst [vmem:[#allocation2 + $0x10] sm:$0xff] %v1732
        %1765 = vst [vmem:[#allocation2 + $0x18] sm:$0xff] %v1733
        %1766 = vst [vmem:[#allocation2 + $0x20] sm:$0xff] %v1734
        %1767 = vst [vmem:[#allocation2 + $0x28] sm:$0xff] %v1735
        %1768 = vst [vmem:[#allocation2 + $0x30] sm:$0xff] %v1736
        %1769 = vst [vmem:[#allocation2 + $0x38] sm:$0xff] %v1737
        %1770 = vst [vmem:[#allocation2 + $0x40] sm:$0xff] %v1738
        %1771 = vst [vmem:[#allocation2 + $0x48] sm:$0xff] %v1739
        %1772 = vst [vmem:[#allocation2 + $0x50] sm:$0xff] %v1740
        %1773 = vst [vmem:[#allocation2 + $0x58] sm:$0xff] %v1741
        %1774 = vst [vmem:[#allocation2 + $0x60] sm:$0xff] %v1742
        %1775 = vst [vmem:[#allocation2 + $0x68] sm:$0xff] %v1743
        %1776 = vst [vmem:[#allocation2 + $0x70] sm:$0xff] %v1744
        %1777 = vst [vmem:[#allocation2 + $0x78] sm:$0xff] %v1745
        %1778 = vst [vmem:[#allocation2 + $0x80] sm:$0xff] %v1746
        %1779 = vst [vmem:[#allocation2 + $0x88] sm:$0xff] %v1747
        %1780 = vst [vmem:[#allocation2 + $0x90] sm:$0xff] %v1748
        %1781 = vst [vmem:[#allocation2 + $0x98] sm:$0xff] %v1749
        %1782 = vst [vmem:[#allocation2 + $0xa0] sm:$0xff] %v1750
        %1783 = vst [vmem:[#allocation2 + $0xa8] sm:$0xff] %v1751
        %1784 = vst [vmem:[#allocation2 + $0xb0] sm:$0xff] %v1752
        %1785 = vst [vmem:[#allocation2 + $0xb8] sm:$0xff] %v1753
        %1786 = vst [vmem:[#allocation2 + $0xc0] sm:$0xff] %v1754
        %1787 = vst [vmem:[#allocation2 + $0xc8] sm:$0xff] %v1755
        %1788 = vst [vmem:[#allocation2 + $0xd0] sm:$0xff] %v1756
        %1789 = vst [vmem:[#allocation2 + $0xd8] sm:$0xff] %v1757
        %1790 = vst [vmem:[#allocation2 + $0xe0] sm:$0xff] %v1758
        %1791 = vst [vmem:[#allocation2 + $0xe8] sm:$0xff] %v1759
        %1792 = vst [vmem:[#allocation2 + $0xf0] sm:$0xff] %v1760
        %1793 = vst [vmem:[#allocation2 + $0xf8] sm:$0xff] %v1761
        %p1794 = scmp.eq.s32.totalorder %s22, 1
        // Predicated region
        $region60: #{cohere_mlp.1} parent=50 // pred_check
          %p1795 = pneg %p1794
        $region61: #{cohere_mlp.1} parent=50 // pred_check_branch
          %1797 = sbr.rel (%p1795) target = $region63
        $region62: #{cohere_mlp.1} parent=50 // pred_region
          %v1798 = vld [vmem:[#allocation2] sm:$0xff]
          %v1799 = vld [vmem:[#allocation2 + $0x8] sm:$0xff]
          %v1800 = vld [vmem:[#allocation2 + $0x10] sm:$0xff]
          %v1801 = vld [vmem:[#allocation2 + $0x18] sm:$0xff]
          %v1802 = vld [vmem:[#allocation2 + $0x20] sm:$0xff]
          %v1803 = vld [vmem:[#allocation2 + $0x28] sm:$0xff]
          %v1804 = vld [vmem:[#allocation2 + $0x30] sm:$0xff]
          %v1805 = vld [vmem:[#allocation2 + $0x38] sm:$0xff]
          %v1806 = vld [vmem:[#allocation2 + $0x40] sm:$0xff]
          %v1807 = vld [vmem:[#allocation2 + $0x48] sm:$0xff]
          %v1808 = vld [vmem:[#allocation2 + $0x50] sm:$0xff]
          %v1809 = vld [vmem:[#allocation2 + $0x58] sm:$0xff]
          %v1810 = vld [vmem:[#allocation2 + $0x60] sm:$0xff]
          %v1811 = vld [vmem:[#allocation2 + $0x68] sm:$0xff]
          %v1812 = vld [vmem:[#allocation2 + $0x70] sm:$0xff]
          %v1813 = vld [vmem:[#allocation2 + $0x78] sm:$0xff]
          %v1814 = vld [vmem:[#allocation2 + $0x80] sm:$0xff]
          %v1815 = vld [vmem:[#allocation2 + $0x88] sm:$0xff]
          %v1816 = vld [vmem:[#allocation2 + $0x90] sm:$0xff]
          %v1817 = vld [vmem:[#allocation2 + $0x98] sm:$0xff]
          %v1818 = vld [vmem:[#allocation2 + $0xa0] sm:$0xff]
          %v1819 = vld [vmem:[#allocation2 + $0xa8] sm:$0xff]
          %v1820 = vld [vmem:[#allocation2 + $0xb0] sm:$0xff]
          %v1821 = vld [vmem:[#allocation2 + $0xb8] sm:$0xff]
          %v1822 = vld [vmem:[#allocation2 + $0xc0] sm:$0xff]
          %v1823 = vld [vmem:[#allocation2 + $0xc8] sm:$0xff]
          %v1824 = vld [vmem:[#allocation2 + $0xd0] sm:$0xff]
          %v1825 = vld [vmem:[#allocation2 + $0xd8] sm:$0xff]
          %v1826 = vld [vmem:[#allocation2 + $0xe0] sm:$0xff]
          %v1827 = vld [vmem:[#allocation2 + $0xe8] sm:$0xff]
          %v1828 = vld [vmem:[#allocation2 + $0xf0] sm:$0xff]
          %v1829 = vld [vmem:[#allocation2 + $0xf8] sm:$0xff]
          %v1830 = vpack.c.bf16 %v1800, %v1798
          %v1831 = vpack.c.bf16 %v1801, %v1799
          %v1832 = vpack.c.bf16 %v1804, %v1802
          %v1833 = vpack.c.bf16 %v1805, %v1803
          %v1834 = vpack.c.bf16 %v1808, %v1806
          %v1835 = vpack.c.bf16 %v1809, %v1807
          %v1836 = vpack.c.bf16 %v1812, %v1810
          %v1837 = vpack.c.bf16 %v1813, %v1811
          %v1838 = vpack.c.bf16 %v1816, %v1814
          %v1839 = vpack.c.bf16 %v1817, %v1815
          %v1840 = vpack.c.bf16 %v1820, %v1818
          %v1841 = vpack.c.bf16 %v1821, %v1819
          %v1842 = vpack.c.bf16 %v1824, %v1822
          %v1843 = vpack.c.bf16 %v1825, %v1823
          %v1844 = vpack.c.bf16 %v1828, %v1826
          %v1845 = vpack.c.bf16 %v1829, %v1827
          %v1862 = vunpack.c.l.b16 %v1830
          %v1863 = vunpack.c.l.b16 %v1831
          %v1864 = vunpack.c.h.b16 %v1830
          %v1865 = vunpack.c.h.b16 %v1831
          %v1866 = vunpack.c.l.b16 %v1832
          %v1867 = vunpack.c.l.b16 %v1833
          %v1868 = vunpack.c.h.b16 %v1832
          %v1869 = vunpack.c.h.b16 %v1833
          %v1870 = vunpack.c.l.b16 %v1834
          %v1871 = vunpack.c.l.b16 %v1835
          %v1872 = vunpack.c.h.b16 %v1834
          %v1873 = vunpack.c.h.b16 %v1835
          %v1874 = vunpack.c.l.b16 %v1836
          %v1875 = vunpack.c.l.b16 %v1837
          %v1876 = vunpack.c.h.b16 %v1836
          %v1877 = vunpack.c.h.b16 %v1837
          %v1878 = vunpack.c.l.b16 %v1838
          %v1879 = vunpack.c.l.b16 %v1839
          %v1880 = vunpack.c.h.b16 %v1838
          %v1881 = vunpack.c.h.b16 %v1839
          %v1882 = vunpack.c.l.b16 %v1840
          %v1883 = vunpack.c.l.b16 %v1841
          %v1884 = vunpack.c.h.b16 %v1840
          %v1885 = vunpack.c.h.b16 %v1841
          %v1886 = vunpack.c.l.b16 %v1842
          %v1887 = vunpack.c.l.b16 %v1843
          %v1888 = vunpack.c.h.b16 %v1842
          %v1889 = vunpack.c.h.b16 %v1843
          %v1890 = vunpack.c.l.b16 %v1844
          %v1891 = vunpack.c.l.b16 %v1845
          %v1892 = vunpack.c.h.b16 %v1844
          %v1893 = vunpack.c.h.b16 %v1845
          %v1894 = vpack.c.b16 %v1863, %v1862
          %v1895 = vpack.c.b16 %v1865, %v1864
          %v1896 = vpack.c.b16 %v1867, %v1866
          %v1897 = vpack.c.b16 %v1869, %v1868
          %v1898 = vpack.c.b16 %v1871, %v1870
          %v1899 = vpack.c.b16 %v1873, %v1872
          %v1900 = vpack.c.b16 %v1875, %v1874
          %v1901 = vpack.c.b16 %v1877, %v1876
          %v1902 = vpack.c.b16 %v1879, %v1878
          %v1903 = vpack.c.b16 %v1881, %v1880
          %v1904 = vpack.c.b16 %v1883, %v1882
          %v1905 = vpack.c.b16 %v1885, %v1884
          %v1906 = vpack.c.b16 %v1887, %v1886
          %v1907 = vpack.c.b16 %v1889, %v1888
          %v1908 = vpack.c.b16 %v1891, %v1890
          %v1909 = vpack.c.b16 %v1893, %v1892
          %1926 = vst [vmem:[%s362] sm:$0xff] %v1894
          %1927 = vst [vmem:[%s362 + $0x8] sm:$0xff] %v1895
          %1928 = vst [vmem:[%s362 + $0x10] sm:$0xff] %v1896
          %1929 = vst [vmem:[%s362 + $0x18] sm:$0xff] %v1897
          %1930 = vst [vmem:[%s362 + $0x20] sm:$0xff] %v1898
          %1931 = vst [vmem:[%s362 + $0x28] sm:$0xff] %v1899
          %1932 = vst [vmem:[%s362 + $0x30] sm:$0xff] %v1900
          %1933 = vst [vmem:[%s362 + $0x38] sm:$0xff] %v1901
          %1934 = vst [vmem:[%s362 + $0x40] sm:$0xff] %v1902
          %1935 = vst [vmem:[%s362 + $0x48] sm:$0xff] %v1903
          %1936 = vst [vmem:[%s362 + $0x50] sm:$0xff] %v1904
          %1937 = vst [vmem:[%s362 + $0x58] sm:$0xff] %v1905
          %1938 = vst [vmem:[%s362 + $0x60] sm:$0xff] %v1906
          %1939 = vst [vmem:[%s362 + $0x68] sm:$0xff] %v1907
          %1940 = vst [vmem:[%s362 + $0x70] sm:$0xff] %v1908
          %1941 = vst [vmem:[%s362 + $0x78] sm:$0xff] %v1909
        $region63: #{cohere_mlp.1} parent=50 // pred_fallthru
          _
        %s1942 = sand.u32 %s115, 1
        %s1943 = scalar_lea.sflag [#allocation5], %s1942
        %s1944 = sand.u32 %s115, 1
        %s1945 = smul.addr %s1944, 128
        %s1946 = scalar_lea.vmem [#allocation4], %s1945
        // Predicated region
        $region64: #{cohere_mlp.1} parent=50 // pred_check
          %p1947 = pneg %p125
        $region65: #{cohere_mlp.1} parent=50 // pred_check_branch
          %1949 = sbr.rel (%p1947) target = $region67
        $region66: #{cohere_mlp.1} parent=50 // pred_region
          %s1950 = smul.u32 16, %s21
          %s1952 = ssub.s32 2048, 2048
          %1953 = vsyncadd %s1943, %s1952
          %s1954 = smul.addr %s1950, 2
          %s1955 = smul.addr %s1954, 64
          %s1956 = scalar_lea.hbm %s3, %s1955
          %s1957 = sshll.u32 %s1946, 4
          %s1958 = int_to_ptr.vmem [resolvable:$true] %s1957
          %1963 = dma.vmem_to_hbm [thread:$0]  %s1958, 2048, %s1956, %s1943, 128, 128, 8
        $region67: #{cohere_mlp.1} parent=50 // pred_fallthru
          _
      $region51: #{cohere_mlp.1} parent=5 // pred_fallthru
        _
      %p1964 = scmp.le.s32.totalorder 2, %s12
      // Predicated region
      $region68: #{cohere_mlp.1} parent=5 // pred_check
        %p1965 = pneg %p1964
      $region69: #{cohere_mlp.1} parent=5 // pred_check_branch
        %1967 = sbr.rel (%p1965) target = $region71
      $region70: #{cohere_mlp.1} parent=5 // pred_region
        %s1968 = ssub.s32 %s12, 2
        // Predicated region
        $region72: #{cohere_mlp.1} parent=70 // pred_check
          %p1969 = pneg %p131
        $region73: #{cohere_mlp.1} parent=70 // pred_check_branch
          %1971 = sbr.rel (%p1969) target = $region75
        $region74: #{cohere_mlp.1} parent=70 // pred_region
          %s1972 = sand.u32 %s116, 1
          %s1973 = scalar_lea.sflag [#allocation5], %s1972
          %s1974 = sand.u32 %s116, 1
          %s1975 = smul.addr %s1974, 128
          %s1976 = scalar_lea.vmem [#allocation4], %s1975
          %1977 = dma.done %s1973, 2048
        $region75: #{cohere_mlp.1} parent=70 // pred_fallthru
          _
      $region71: #{cohere_mlp.1} parent=5 // pred_fallthru
        _
    $region6: #{cohere_mlp.1} parent=1 // loop_footer
      %s16 = sadd.s32 1, %s12
    $region7: #{cohere_mlp.1} parent=1 // loop_footer_branch
      %11 = sbr.rel target = $region3
    $region8: #{cohere_mlp.1} parent=1 // loop_exit
      _
    %1978 = vsyncpa [#allocation5], 1
    %s1979 = scalar_lea.sflag [#allocation5], 1
    %1980 = vsyncpa %s1979, 1

</llo_original>
